<compile_context>
chip_gen: v6e
topology: v6e:2x2x1
jax: 0.10.0
libtpu: 0.0.40
codegen_flags: <defaults>
</compile_context>

<pallas_src>
import jax
import jax.numpy as jnp
from jax.experimental import pallas as pl
from jax.experimental.pallas import tpu as pltpu


def _pick_tile_rows(Ho, Cin, Cout, W, Wo, itemsize=4, budget_bytes=4 << 20):
    """Pick TH output rows per grid step.

    The last-two dims of every block must be multiples of (8, 128) or equal the
    full array dims, so TH is a multiple of 8 dividing Ho when possible
    (falling back to the full extent Ho for tiny images), and is capped by a
    small VMEM budget (x tile + out tile, double buffered).
    """
    cands = [t for t in range(8, Ho + 1, 8) if Ho % t == 0]
    if not cands:
        return Ho  # full extent is always a legal block shape
    fits = [t for t in cands
            if (Cin * 2 * t * W + Cout * t * Wo) * itemsize * 2 <= budget_bytes]
    return max(fits) if fits else min(cands)


def _make_downscale_kernel(Cin, Cout, TH, W, Wo):
    KH, KW = 2, 2

    def kernel(w_ref, x_ref, r_ref, s_ref, o_ref):
        # w_ref: (Cout*Cin*4,)  SMEM  — conv weights, PyTorch OIHW order
        # x_ref: (1, Cin, 2*TH, W) VMEM — input slab (NCHW block)
        # r_ref: (2, TH, 2*TH)  VMEM — row selectors R_kh (0/1)
        # s_ref: (2, W, Wo)     VMEM — column selectors S_kw (0/1)
        # o_ref: (1, Cout, TH, Wo) VMEM — output block (NCHW)
        rsel = (r_ref[0], r_ref[1])      # hoisted: (TH, 2*TH)
        ssel = (s_ref[0], s_ref[1])      # hoisted: (W, Wo)

        # 1) Fused im2col: extract the 4 strided taps per input channel with
        #    two tiny constant selection matmuls. tap[ho, wo] = x[2ho+kh, 2wo+kw].
        #    The op is memory-bound, so these MXU MACs are free.
        taps = {}
        for ci in range(Cin):
            x_c = x_ref[0, ci]           # (2*TH, W)
            for kh in range(KH):
                rows = jnp.dot(rsel[kh], x_c,
                               preferred_element_type=jnp.float32)      # (TH, W)
                for kw in range(KW):
                    taps[ci, kh, kw] = jnp.dot(
                        rows, ssel[kw],
                        preferred_element_type=jnp.float32)             # (TH, Wo)

        # 2) Channel mixing on the VPU: Cout*Cin*4 scalar-broadcast MACs with
        #    the real conv weights read from SMEM (keeps full conv semantics).
        for co in range(Cout):
            acc = jnp.zeros((TH, Wo), jnp.float32)
            for ci in range(Cin):
                for kh in range(KH):
                    for kw in range(KW):
                        widx = ((co * Cin + ci) * KH + kh) * KW + kw
                        acc = acc + w_ref[widx] * taps[ci, kh, kw]
            o_ref[0, co] = acc.astype(o_ref.dtype)

    return kernel


def downscale(x, weights):
    """x: (B, C, H, W) float32 NCHW; weights: (Cout, Cin, 2, 2) float32.

    Equivalent to torch.nn.functional.conv2d(x, weights, stride=2).
    """
    B, C, H, W = x.shape
    Cout, Cin, KH, KW = weights.shape
    assert Cin == C and KH == 2 and KW == 2
    assert H % 2 == 0 and W % 2 == 0
    Ho, Wo = H // 2, W // 2

    TH = _pick_tile_rows(Ho, Cin, Cout, W, Wo)
    assert Ho % TH == 0
    grid = (B, Ho // TH)

    dtype = x.dtype
    # Constant 0/1 "take every other row / column" selection matrices.
    r_mats = jnp.stack([
        (jnp.arange(2 * TH)[None, :] == (2 * jnp.arange(TH)[:, None] + kh)
         ).astype(dtype) for kh in range(KH)])                    # (2, TH, 2*TH)
    s_mats = jnp.stack([
        (jnp.arange(W)[:, None] == (2 * jnp.arange(Wo)[None, :] + kw)
         ).astype(dtype) for kw in range(KW)])                    # (2, W, Wo)
    w_flat = weights.astype(jnp.float32).reshape(-1)              # SMEM scalars

    kernel = _make_downscale_kernel(Cin, Cout, TH, W, Wo)

    cost = pl.CostEstimate(
        flops=2 * B * Ho * Wo * Cout * Cin * KH * KW,
        transcendentals=0,
        bytes_accessed=4 * (x.size + B * Cout * Ho * Wo + weights.size),
    )

    return pl.pallas_call(
        kernel,
        out_shape=jax.ShapeDtypeStruct((B, Cout, Ho, Wo), dtype),
        grid_spec=pltpu.PrefetchScalarGridSpec(
            num_scalar_prefetch=0,
            grid=grid,
            in_specs=[
                pl.BlockSpec(memory_space=pltpu.MemorySpace.SMEM),          # weights
                pl.BlockSpec((1, Cin, 2 * TH, W), lambda b, t: (b, 0, t, 0)),  # x slab
                pl.BlockSpec((KH, TH, 2 * TH), lambda b, t: (0, 0, 0)),     # R (resident)
                pl.BlockSpec((KW, W, Wo), lambda b, t: (0, 0, 0)),          # S (resident)
            ],
            out_specs=pl.BlockSpec((1, Cout, TH, Wo), lambda b, t: (b, 0, t, 0)),
        ),
        compiler_params=pltpu.CompilerParams(
            dimension_semantics=("parallel", "parallel"),   # both axes independent
            vmem_limit_bytes=32 * 1024 * 1024,              # safe on v5e/v6e/v7x
        ),
        cost_estimate=cost,
    )(w_flat, x, r_mats, s_mats)


if __name__ == "__main__":
    B, C, H, W = 2, 4, 16, 16

    key = jax.random.PRNGKey(0)
    x = jax.random.normal(key, (B, C, H, W), dtype=jnp.float32)

    # Deterministic parameters, exactly as the module's __init__:
    # torch.full((channels, channels, 2, 2), 0.25)
    weights = jnp.full((C, C, 2, 2), 0.25, dtype=jnp.float32)

    y = downscale(x, weights)
    y = jax.block_until_ready(y)

    # Reference check against XLA's conv (same semantics as F.conv2d stride=2).
    y_ref = jax.lax.conv_general_dilated(
        x, weights, window_strides=(2, 2), padding="VALID",
        dimension_numbers=("NCHW", "OIHW", "NCHW"),
    )
    assert y.shape == (B, C, H // 2, W // 2), y.shape
    assert jnp.allclose(y, y_ref, atol=1e-4, rtol=1e-4), float(
        jnp.max(jnp.abs(y - y_ref))
    )

    print("KERNEL_OK")
</pallas_src>

<mosaic_0001>
module attributes {stable_mosaic.version = 11 : i64} {
  func.func @kernel(%arg0: i32, %arg1: i32, %arg2: memref<64xf32, #tpu.memory_space<smem>>, %arg3: memref<1x4x16x16xf32, #tpu.memory_space<vmem>>, %arg4: memref<2x8x16xf32, #tpu.memory_space<vmem>>, %arg5: memref<2x16x8xf32, #tpu.memory_space<vmem>>, %arg6: memref<1x4x8x8xf32, #tpu.memory_space<vmem>>) attributes {dimension_semantics = [#tpu.dimension_semantics<parallel>, #tpu.dimension_semantics<parallel>], iteration_bounds = array<i64: 2, 1>, scalar_prefetch = 0 : i64, scratch_operands = 0 : i64, tpu.core_type = #tpu.core_type<tc>, window_params = [{transform_indices = @transform_0, window_bounds = array<i64: 64>}, {transform_indices = @transform_1, window_bounds = array<i64: 1, 4, 16, 16>}, {pipeline_mode = #tpu.pipeline_mode<synchronous>, transform_indices = @transform_2, window_bounds = array<i64: 2, 8, 16>}, {pipeline_mode = #tpu.pipeline_mode<synchronous>, transform_indices = @transform_3, window_bounds = array<i64: 2, 16, 8>}, {transform_indices = @transform_4, window_bounds = array<i64: 1, 4, 8, 8>}]} {
    %c0 = arith.constant 0 : index
    %c0_0 = arith.constant 0 : index
    %c0_1 = arith.constant 0 : index
    %0 = vector.load %arg4[%c0, %c0_0, %c0_1] : memref<2x8x16xf32, #tpu.memory_space<vmem>>, vector<1x8x16xf32>
    %1 = vector.shape_cast %0 : vector<1x8x16xf32> to vector<8x16xf32>
    %c1 = arith.constant 1 : index
    %c0_2 = arith.constant 0 : index
    %c0_3 = arith.constant 0 : index
    %2 = vector.load %arg4[%c1, %c0_2, %c0_3] : memref<2x8x16xf32, #tpu.memory_space<vmem>>, vector<1x8x16xf32>
    %3 = vector.shape_cast %2 : vector<1x8x16xf32> to vector<8x16xf32>
    %c0_4 = arith.constant 0 : index
    %c0_5 = arith.constant 0 : index
    %c0_6 = arith.constant 0 : index
    %4 = vector.load %arg5[%c0_4, %c0_5, %c0_6] : memref<2x16x8xf32, #tpu.memory_space<vmem>>, vector<1x16x8xf32>
    %5 = vector.shape_cast %4 : vector<1x16x8xf32> to vector<16x8xf32>
    %c1_7 = arith.constant 1 : index
    %c0_8 = arith.constant 0 : index
    %c0_9 = arith.constant 0 : index
    %6 = vector.load %arg5[%c1_7, %c0_8, %c0_9] : memref<2x16x8xf32, #tpu.memory_space<vmem>>, vector<1x16x8xf32>
    %7 = vector.shape_cast %6 : vector<1x16x8xf32> to vector<16x8xf32>
    %c0_10 = arith.constant 0 : index
    %c0_11 = arith.constant 0 : index
    %c0_12 = arith.constant 0 : index
    %c0_13 = arith.constant 0 : index
    %8 = vector.load %arg3[%c0_10, %c0_11, %c0_12, %c0_13] : memref<1x4x16x16xf32, #tpu.memory_space<vmem>>, vector<1x1x16x16xf32>
    %9 = vector.shape_cast %8 : vector<1x1x16x16xf32> to vector<16x16xf32>
    %cst = arith.constant dense<0.000000e+00> : vector<8x16xf32>
    %10 = tpu.matmul %1, %9, %cst {dimension_numbers = #tpu.dot_dimension_numbers<[1], [0], [0], [1], [0, 0, 1, 1], [], []>} : vector<8x16xf32>, vector<16x16xf32>, vector<8x16xf32> -> vector<8x16xf32>
    %cst_14 = arith.constant dense<0.000000e+00> : vector<8x8xf32>
    %11 = tpu.matmul %10, %5, %cst_14 {dimension_numbers = #tpu.dot_dimension_numbers<[1], [0], [0], [1], [0, 0, 1, 1], [], []>} : vector<8x16xf32>, vector<16x8xf32>, vector<8x8xf32> -> vector<8x8xf32>
    %cst_15 = arith.constant dense<0.000000e+00> : vector<8x8xf32>
    %12 = tpu.matmul %10, %7, %cst_15 {dimension_numbers = #tpu.dot_dimension_numbers<[1], [0], [0], [1], [0, 0, 1, 1], [], []>} : vector<8x16xf32>, vector<16x8xf32>, vector<8x8xf32> -> vector<8x8xf32>
    %cst_16 = arith.constant dense<0.000000e+00> : vector<8x16xf32>
    %13 = tpu.matmul %3, %9, %cst_16 {dimension_numbers = #tpu.dot_dimension_numbers<[1], [0], [0], [1], [0, 0, 1, 1], [], []>} : vector<8x16xf32>, vector<16x16xf32>, vector<8x16xf32> -> vector<8x16xf32>
    %cst_17 = arith.constant dense<0.000000e+00> : vector<8x8xf32>
    %14 = tpu.matmul %13, %5, %cst_17 {dimension_numbers = #tpu.dot_dimension_numbers<[1], [0], [0], [1], [0, 0, 1, 1], [], []>} : vector<8x16xf32>, vector<16x8xf32>, vector<8x8xf32> -> vector<8x8xf32>
    %cst_18 = arith.constant dense<0.000000e+00> : vector<8x8xf32>
    %15 = tpu.matmul %13, %7, %cst_18 {dimension_numbers = #tpu.dot_dimension_numbers<[1], [0], [0], [1], [0, 0, 1, 1], [], []>} : vector<8x16xf32>, vector<16x8xf32>, vector<8x8xf32> -> vector<8x8xf32>
    %c0_19 = arith.constant 0 : index
    %c1_20 = arith.constant 1 : index
    %c0_21 = arith.constant 0 : index
    %c0_22 = arith.constant 0 : index
    %16 = vector.load %arg3[%c0_19, %c1_20, %c0_21, %c0_22] : memref<1x4x16x16xf32, #tpu.memory_space<vmem>>, vector<1x1x16x16xf32>
    %17 = vector.shape_cast %16 : vector<1x1x16x16xf32> to vector<16x16xf32>
    %cst_23 = arith.constant dense<0.000000e+00> : vector<8x16xf32>
    %18 = tpu.matmul %1, %17, %cst_23 {dimension_numbers = #tpu.dot_dimension_numbers<[1], [0], [0], [1], [0, 0, 1, 1], [], []>} : vector<8x16xf32>, vector<16x16xf32>, vector<8x16xf32> -> vector<8x16xf32>
    %cst_24 = arith.constant dense<0.000000e+00> : vector<8x8xf32>
    %19 = tpu.matmul %18, %5, %cst_24 {dimension_numbers = #tpu.dot_dimension_numbers<[1], [0], [0], [1], [0, 0, 1, 1], [], []>} : vector<8x16xf32>, vector<16x8xf32>, vector<8x8xf32> -> vector<8x8xf32>
    %cst_25 = arith.constant dense<0.000000e+00> : vector<8x8xf32>
    %20 = tpu.matmul %18, %7, %cst_25 {dimension_numbers = #tpu.dot_dimension_numbers<[1], [0], [0], [1], [0, 0, 1, 1], [], []>} : vector<8x16xf32>, vector<16x8xf32>, vector<8x8xf32> -> vector<8x8xf32>
    %cst_26 = arith.constant dense<0.000000e+00> : vector<8x16xf32>
    %21 = tpu.matmul %3, %17, %cst_26 {dimension_numbers = #tpu.dot_dimension_numbers<[1], [0], [0], [1], [0, 0, 1, 1], [], []>} : vector<8x16xf32>, vector<16x16xf32>, vector<8x16xf32> -> vector<8x16xf32>
    %cst_27 = arith.constant dense<0.000000e+00> : vector<8x8xf32>
    %22 = tpu.matmul %21, %5, %cst_27 {dimension_numbers = #tpu.dot_dimension_numbers<[1], [0], [0], [1], [0, 0, 1, 1], [], []>} : vector<8x16xf32>, vector<16x8xf32>, vector<8x8xf32> -> vector<8x8xf32>
    %cst_28 = arith.constant dense<0.000000e+00> : vector<8x8xf32>
    %23 = tpu.matmul %21, %7, %cst_28 {dimension_numbers = #tpu.dot_dimension_numbers<[1], [0], [0], [1], [0, 0, 1, 1], [], []>} : vector<8x16xf32>, vector<16x8xf32>, vector<8x8xf32> -> vector<8x8xf32>
    %c0_29 = arith.constant 0 : index
    %c2 = arith.constant 2 : index
    %c0_30 = arith.constant 0 : index
    %c0_31 = arith.constant 0 : index
    %24 = vector.load %arg3[%c0_29, %c2, %c0_30, %c0_31] : memref<1x4x16x16xf32, #tpu.memory_space<vmem>>, vector<1x1x16x16xf32>
    %25 = vector.shape_cast %24 : vector<1x1x16x16xf32> to vector<16x16xf32>
    %cst_32 = arith.constant dense<0.000000e+00> : vector<8x16xf32>
    %26 = tpu.matmul %1, %25, %cst_32 {dimension_numbers = #tpu.dot_dimension_numbers<[1], [0], [0], [1], [0, 0, 1, 1], [], []>} : vector<8x16xf32>, vector<16x16xf32>, vector<8x16xf32> -> vector<8x16xf32>
    %cst_33 = arith.constant dense<0.000000e+00> : vector<8x8xf32>
    %27 = tpu.matmul %26, %5, %cst_33 {dimension_numbers = #tpu.dot_dimension_numbers<[1], [0], [0], [1], [0, 0, 1, 1], [], []>} : vector<8x16xf32>, vector<16x8xf32>, vector<8x8xf32> -> vector<8x8xf32>
    %cst_34 = arith.constant dense<0.000000e+00> : vector<8x8xf32>
    %28 = tpu.matmul %26, %7, %cst_34 {dimension_numbers = #tpu.dot_dimension_numbers<[1], [0], [0], [1], [0, 0, 1, 1], [], []>} : vector<8x16xf32>, vector<16x8xf32>, vector<8x8xf32> -> vector<8x8xf32>
    %cst_35 = arith.constant dense<0.000000e+00> : vector<8x16xf32>
    %29 = tpu.matmul %3, %25, %cst_35 {dimension_numbers = #tpu.dot_dimension_numbers<[1], [0], [0], [1], [0, 0, 1, 1], [], []>} : vector<8x16xf32>, vector<16x16xf32>, vector<8x16xf32> -> vector<8x16xf32>
    %cst_36 = arith.constant dense<0.000000e+00> : vector<8x8xf32>
    %30 = tpu.matmul %29, %5, %cst_36 {dimension_numbers = #tpu.dot_dimension_numbers<[1], [0], [0], [1], [0, 0, 1, 1], [], []>} : vector<8x16xf32>, vector<16x8xf32>, vector<8x8xf32> -> vector<8x8xf32>
    %cst_37 = arith.constant dense<0.000000e+00> : vector<8x8xf32>
    %31 = tpu.matmul %29, %7, %cst_37 {dimension_numbers = #tpu.dot_dimension_numbers<[1], [0], [0], [1], [0, 0, 1, 1], [], []>} : vector<8x16xf32>, vector<16x8xf32>, vector<8x8xf32> -> vector<8x8xf32>
    %c0_38 = arith.constant 0 : index
    %c3 = arith.constant 3 : index
    %c0_39 = arith.constant 0 : index
    %c0_40 = arith.constant 0 : index
    %32 = vector.load %arg3[%c0_38, %c3, %c0_39, %c0_40] : memref<1x4x16x16xf32, #tpu.memory_space<vmem>>, vector<1x1x16x16xf32>
    %33 = vector.shape_cast %32 : vector<1x1x16x16xf32> to vector<16x16xf32>
    %cst_41 = arith.constant dense<0.000000e+00> : vector<8x16xf32>
    %34 = tpu.matmul %1, %33, %cst_41 {dimension_numbers = #tpu.dot_dimension_numbers<[1], [0], [0], [1], [0, 0, 1, 1], [], []>} : vector<8x16xf32>, vector<16x16xf32>, vector<8x16xf32> -> vector<8x16xf32>
    %cst_42 = arith.constant dense<0.000000e+00> : vector<8x8xf32>
    %35 = tpu.matmul %34, %5, %cst_42 {dimension_numbers = #tpu.dot_dimension_numbers<[1], [0], [0], [1], [0, 0, 1, 1], [], []>} : vector<8x16xf32>, vector<16x8xf32>, vector<8x8xf32> -> vector<8x8xf32>
    %cst_43 = arith.constant dense<0.000000e+00> : vector<8x8xf32>
    %36 = tpu.matmul %34, %7, %cst_43 {dimension_numbers = #tpu.dot_dimension_numbers<[1], [0], [0], [1], [0, 0, 1, 1], [], []>} : vector<8x16xf32>, vector<16x8xf32>, vector<8x8xf32> -> vector<8x8xf32>
    %cst_44 = arith.constant dense<0.000000e+00> : vector<8x16xf32>
    %37 = tpu.matmul %3, %33, %cst_44 {dimension_numbers = #tpu.dot_dimension_numbers<[1], [0], [0], [1], [0, 0, 1, 1], [], []>} : vector<8x16xf32>, vector<16x16xf32>, vector<8x16xf32> -> vector<8x16xf32>
    %cst_45 = arith.constant dense<0.000000e+00> : vector<8x8xf32>
    %38 = tpu.matmul %37, %5, %cst_45 {dimension_numbers = #tpu.dot_dimension_numbers<[1], [0], [0], [1], [0, 0, 1, 1], [], []>} : vector<8x16xf32>, vector<16x8xf32>, vector<8x8xf32> -> vector<8x8xf32>
    %cst_46 = arith.constant dense<0.000000e+00> : vector<8x8xf32>
    %39 = tpu.matmul %37, %7, %cst_46 {dimension_numbers = #tpu.dot_dimension_numbers<[1], [0], [0], [1], [0, 0, 1, 1], [], []>} : vector<8x16xf32>, vector<16x8xf32>, vector<8x8xf32> -> vector<8x8xf32>
    %cst_47 = arith.constant 0.000000e+00 : f32
    %40 = vector.broadcast %cst_47 : f32 to vector<8x8xf32>
    %c0_48 = arith.constant 0 : index
    %41 = memref.load %arg2[%c0_48] : memref<64xf32, #tpu.memory_space<smem>>
    %42 = vector.broadcast %41 : f32 to vector<8x8xf32>
    %43 = arith.mulf %42, %11 : vector<8x8xf32>
    %44 = arith.addf %40, %43 : vector<8x8xf32>
    %c1_49 = arith.constant 1 : index
    %45 = memref.load %arg2[%c1_49] : memref<64xf32, #tpu.memory_space<smem>>
    %46 = vector.broadcast %45 : f32 to vector<8x8xf32>
    %47 = arith.mulf %46, %12 : vector<8x8xf32>
    %48 = arith.addf %44, %47 : vector<8x8xf32>
    %c2_50 = arith.constant 2 : index
    %49 = memref.load %arg2[%c2_50] : memref<64xf32, #tpu.memory_space<smem>>
    %50 = vector.broadcast %49 : f32 to vector<8x8xf32>
    %51 = arith.mulf %50, %14 : vector<8x8xf32>
    %52 = arith.addf %48, %51 : vector<8x8xf32>
    %c3_51 = arith.constant 3 : index
    %53 = memref.load %arg2[%c3_51] : memref<64xf32, #tpu.memory_space<smem>>
    %54 = vector.broadcast %53 : f32 to vector<8x8xf32>
    %55 = arith.mulf %54, %15 : vector<8x8xf32>
    %56 = arith.addf %52, %55 : vector<8x8xf32>
    %c4 = arith.constant 4 : index
    %57 = memref.load %arg2[%c4] : memref<64xf32, #tpu.memory_space<smem>>
    %58 = vector.broadcast %57 : f32 to vector<8x8xf32>
    %59 = arith.mulf %58, %19 : vector<8x8xf32>
    %60 = arith.addf %56, %59 : vector<8x8xf32>
    %c5 = arith.constant 5 : index
    %61 = memref.load %arg2[%c5] : memref<64xf32, #tpu.memory_space<smem>>
    %62 = vector.broadcast %61 : f32 to vector<8x8xf32>
    %63 = arith.mulf %62, %20 : vector<8x8xf32>
    %64 = arith.addf %60, %63 : vector<8x8xf32>
    %c6 = arith.constant 6 : index
    %65 = memref.load %arg2[%c6] : memref<64xf32, #tpu.memory_space<smem>>
    %66 = vector.broadcast %65 : f32 to vector<8x8xf32>
    %67 = arith.mulf %66, %22 : vector<8x8xf32>
    %68 = arith.addf %64, %67 : vector<8x8xf32>
    %c7 = arith.constant 7 : index
    %69 = memref.load %arg2[%c7] : memref<64xf32, #tpu.memory_space<smem>>
    %70 = vector.broadcast %69 : f32 to vector<8x8xf32>
    %71 = arith.mulf %70, %23 : vector<8x8xf32>
    %72 = arith.addf %68, %71 : vector<8x8xf32>
    %c8 = arith.constant 8 : index
    %73 = memref.load %arg2[%c8] : memref<64xf32, #tpu.memory_space<smem>>
    %74 = vector.broadcast %73 : f32 to vector<8x8xf32>
    %75 = arith.mulf %74, %27 : vector<8x8xf32>
    %76 = arith.addf %72, %75 : vector<8x8xf32>
    %c9 = arith.constant 9 : index
    %77 = memref.load %arg2[%c9] : memref<64xf32, #tpu.memory_space<smem>>
    %78 = vector.broadcast %77 : f32 to vector<8x8xf32>
    %79 = arith.mulf %78, %28 : vector<8x8xf32>
    %80 = arith.addf %76, %79 : vector<8x8xf32>
    %c10 = arith.constant 10 : index
    %81 = memref.load %arg2[%c10] : memref<64xf32, #tpu.memory_space<smem>>
    %82 = vector.broadcast %81 : f32 to vector<8x8xf32>
    %83 = arith.mulf %82, %30 : vector<8x8xf32>
    %84 = arith.addf %80, %83 : vector<8x8xf32>
    %c11 = arith.constant 11 : index
    %85 = memref.load %arg2[%c11] : memref<64xf32, #tpu.memory_space<smem>>
    %86 = vector.broadcast %85 : f32 to vector<8x8xf32>
    %87 = arith.mulf %86, %31 : vector<8x8xf32>
    %88 = arith.addf %84, %87 : vector<8x8xf32>
    %c12 = arith.constant 12 : index
    %89 = memref.load %arg2[%c12] : memref<64xf32, #tpu.memory_space<smem>>
    %90 = vector.broadcast %89 : f32 to vector<8x8xf32>
    %91 = arith.mulf %90, %35 : vector<8x8xf32>
    %92 = arith.addf %88, %91 : vector<8x8xf32>
    %c13 = arith.constant 13 : index
    %93 = memref.load %arg2[%c13] : memref<64xf32, #tpu.memory_space<smem>>
    %94 = vector.broadcast %93 : f32 to vector<8x8xf32>
    %95 = arith.mulf %94, %36 : vector<8x8xf32>
    %96 = arith.addf %92, %95 : vector<8x8xf32>
    %c14 = arith.constant 14 : index
    %97 = memref.load %arg2[%c14] : memref<64xf32, #tpu.memory_space<smem>>
    %98 = vector.broadcast %97 : f32 to vector<8x8xf32>
    %99 = arith.mulf %98, %38 : vector<8x8xf32>
    %100 = arith.addf %96, %99 : vector<8x8xf32>
    %c15 = arith.constant 15 : index
    %101 = memref.load %arg2[%c15] : memref<64xf32, #tpu.memory_space<smem>>
    %102 = vector.broadcast %101 : f32 to vector<8x8xf32>
    %103 = arith.mulf %102, %39 : vector<8x8xf32>
    %104 = arith.addf %100, %103 : vector<8x8xf32>
    %c0_52 = arith.constant 0 : index
    %c0_53 = arith.constant 0 : index
    %c0_54 = arith.constant 0 : index
    %c0_55 = arith.constant 0 : index
    %105 = vector.load %arg6[%c0_52, %c0_53, %c0_54, %c0_55] : memref<1x4x8x8xf32, #tpu.memory_space<vmem>>, vector<1x1x8x8xf32>
    %106 = vector.shape_cast %105 : vector<1x1x8x8xf32> to vector<8x8xf32>
    %107 = vector.shape_cast %104 : vector<8x8xf32> to vector<1x1x8x8xf32>
    tpu.vector_store %arg6[%c0_52, %c0_53, %c0_54, %c0_55], %107 {strides = array<i32>} : memref<1x4x8x8xf32, #tpu.memory_space<vmem>>, vector<1x1x8x8xf32>,
    %cst_56 = arith.constant 0.000000e+00 : f32
    %108 = vector.broadcast %cst_56 : f32 to vector<8x8xf32>
    %c16 = arith.constant 16 : index
    %109 = memref.load %arg2[%c16] : memref<64xf32, #tpu.memory_space<smem>>
    %110 = vector.broadcast %109 : f32 to vector<8x8xf32>
    %111 = arith.mulf %110, %11 : vector<8x8xf32>
    %112 = arith.addf %108, %111 : vector<8x8xf32>
    %c17 = arith.constant 17 : index
    %113 = memref.load %arg2[%c17] : memref<64xf32, #tpu.memory_space<smem>>
    %114 = vector.broadcast %113 : f32 to vector<8x8xf32>
    %115 = arith.mulf %114, %12 : vector<8x8xf32>
    %116 = arith.addf %112, %115 : vector<8x8xf32>
    %c18 = arith.constant 18 : index
    %117 = memref.load %arg2[%c18] : memref<64xf32, #tpu.memory_space<smem>>
    %118 = vector.broadcast %117 : f32 to vector<8x8xf32>
    %119 = arith.mulf %118, %14 : vector<8x8xf32>
    %120 = arith.addf %116, %119 : vector<8x8xf32>
    %c19 = arith.constant 19 : index
    %121 = memref.load %arg2[%c19] : memref<64xf32, #tpu.memory_space<smem>>
    %122 = vector.broadcast %121 : f32 to vector<8x8xf32>
    %123 = arith.mulf %122, %15 : vector<8x8xf32>
    %124 = arith.addf %120, %123 : vector<8x8xf32>
    %c20 = arith.constant 20 : index
    %125 = memref.load %arg2[%c20] : memref<64xf32, #tpu.memory_space<smem>>
    %126 = vector.broadcast %125 : f32 to vector<8x8xf32>
    %127 = arith.mulf %126, %19 : vector<8x8xf32>
    %128 = arith.addf %124, %127 : vector<8x8xf32>
    %c21 = arith.constant 21 : index
    %129 = memref.load %arg2[%c21] : memref<64xf32, #tpu.memory_space<smem>>
    %130 = vector.broadcast %129 : f32 to vector<8x8xf32>
    %131 = arith.mulf %130, %20 : vector<8x8xf32>
    %132 = arith.addf %128, %131 : vector<8x8xf32>
    %c22 = arith.constant 22 : index
    %133 = memref.load %arg2[%c22] : memref<64xf32, #tpu.memory_space<smem>>
    %134 = vector.broadcast %133 : f32 to vector<8x8xf32>
    %135 = arith.mulf %134, %22 : vector<8x8xf32>
    %136 = arith.addf %132, %135 : vector<8x8xf32>
    %c23 = arith.constant 23 : index
    %137 = memref.load %arg2[%c23] : memref<64xf32, #tpu.memory_space<smem>>
    %138 = vector.broadcast %137 : f32 to vector<8x8xf32>
    %139 = arith.mulf %138, %23 : vector<8x8xf32>
    %140 = arith.addf %136, %139 : vector<8x8xf32>
    %c24 = arith.constant 24 : index
    %141 = memref.load %arg2[%c24] : memref<64xf32, #tpu.memory_space<smem>>
    %142 = vector.broadcast %141 : f32 to vector<8x8xf32>
    %143 = arith.mulf %142, %27 : vector<8x8xf32>
    %144 = arith.addf %140, %143 : vector<8x8xf32>
    %c25 = arith.constant 25 : index
    %145 = memref.load %arg2[%c25] : memref<64xf32, #tpu.memory_space<smem>>
    %146 = vector.broadcast %145 : f32 to vector<8x8xf32>
    %147 = arith.mulf %146, %28 : vector<8x8xf32>
    %148 = arith.addf %144, %147 : vector<8x8xf32>
    %c26 = arith.constant 26 : index
    %149 = memref.load %arg2[%c26] : memref<64xf32, #tpu.memory_space<smem>>
    %150 = vector.broadcast %149 : f32 to vector<8x8xf32>
    %151 = arith.mulf %150, %30 : vector<8x8xf32>
    %152 = arith.addf %148, %151 : vector<8x8xf32>
    %c27 = arith.constant 27 : index
    %153 = memref.load %arg2[%c27] : memref<64xf32, #tpu.memory_space<smem>>
    %154 = vector.broadcast %153 : f32 to vector<8x8xf32>
    %155 = arith.mulf %154, %31 : vector<8x8xf32>
    %156 = arith.addf %152, %155 : vector<8x8xf32>
    %c28 = arith.constant 28 : index
    %157 = memref.load %arg2[%c28] : memref<64xf32, #tpu.memory_space<smem>>
    %158 = vector.broadcast %157 : f32 to vector<8x8xf32>
    %159 = arith.mulf %158, %35 : vector<8x8xf32>
    %160 = arith.addf %156, %159 : vector<8x8xf32>
    %c29 = arith.constant 29 : index
    %161 = memref.load %arg2[%c29] : memref<64xf32, #tpu.memory_space<smem>>
    %162 = vector.broadcast %161 : f32 to vector<8x8xf32>
    %163 = arith.mulf %162, %36 : vector<8x8xf32>
    %164 = arith.addf %160, %163 : vector<8x8xf32>
    %c30 = arith.constant 30 : index
    %165 = memref.load %arg2[%c30] : memref<64xf32, #tpu.memory_space<smem>>
    %166 = vector.broadcast %165 : f32 to vector<8x8xf32>
    %167 = arith.mulf %166, %38 : vector<8x8xf32>
    %168 = arith.addf %164, %167 : vector<8x8xf32>
    %c31 = arith.constant 31 : index
    %169 = memref.load %arg2[%c31] : memref<64xf32, #tpu.memory_space<smem>>
    %170 = vector.broadcast %169 : f32 to vector<8x8xf32>
    %171 = arith.mulf %170, %39 : vector<8x8xf32>
    %172 = arith.addf %168, %171 : vector<8x8xf32>
    %c0_57 = arith.constant 0 : index
    %c1_58 = arith.constant 1 : index
    %c0_59 = arith.constant 0 : index
    %c0_60 = arith.constant 0 : index
    %173 = vector.load %arg6[%c0_57, %c1_58, %c0_59, %c0_60] : memref<1x4x8x8xf32, #tpu.memory_space<vmem>>, vector<1x1x8x8xf32>
    %174 = vector.shape_cast %173 : vector<1x1x8x8xf32> to vector<8x8xf32>
    %175 = vector.shape_cast %172 : vector<8x8xf32> to vector<1x1x8x8xf32>
    tpu.vector_store %arg6[%c0_57, %c1_58, %c0_59, %c0_60], %175 {strides = array<i32>} : memref<1x4x8x8xf32, #tpu.memory_space<vmem>>, vector<1x1x8x8xf32>,
    %cst_61 = arith.constant 0.000000e+00 : f32
    %176 = vector.broadcast %cst_61 : f32 to vector<8x8xf32>
    %c32 = arith.constant 32 : index
    %177 = memref.load %arg2[%c32] : memref<64xf32, #tpu.memory_space<smem>>
    %178 = vector.broadcast %177 : f32 to vector<8x8xf32>
    %179 = arith.mulf %178, %11 : vector<8x8xf32>
    %180 = arith.addf %176, %179 : vector<8x8xf32>
    %c33 = arith.constant 33 : index
    %181 = memref.load %arg2[%c33] : memref<64xf32, #tpu.memory_space<smem>>
    %182 = vector.broadcast %181 : f32 to vector<8x8xf32>
    %183 = arith.mulf %182, %12 : vector<8x8xf32>
    %184 = arith.addf %180, %183 : vector<8x8xf32>
    %c34 = arith.constant 34 : index
    %185 = memref.load %arg2[%c34] : memref<64xf32, #tpu.memory_space<smem>>
    %186 = vector.broadcast %185 : f32 to vector<8x8xf32>
    %187 = arith.mulf %186, %14 : vector<8x8xf32>
    %188 = arith.addf %184, %187 : vector<8x8xf32>
    %c35 = arith.constant 35 : index
    %189 = memref.load %arg2[%c35] : memref<64xf32, #tpu.memory_space<smem>>
    %190 = vector.broadcast %189 : f32 to vector<8x8xf32>
    %191 = arith.mulf %190, %15 : vector<8x8xf32>
    %192 = arith.addf %188, %191 : vector<8x8xf32>
    %c36 = arith.constant 36 : index
    %193 = memref.load %arg2[%c36] : memref<64xf32, #tpu.memory_space<smem>>
    %194 = vector.broadcast %193 : f32 to vector<8x8xf32>
    %195 = arith.mulf %194, %19 : vector<8x8xf32>
    %196 = arith.addf %192, %195 : vector<8x8xf32>
    %c37 = arith.constant 37 : index
    %197 = memref.load %arg2[%c37] : memref<64xf32, #tpu.memory_space<smem>>
    %198 = vector.broadcast %197 : f32 to vector<8x8xf32>
    %199 = arith.mulf %198, %20 : vector<8x8xf32>
    %200 = arith.addf %196, %199 : vector<8x8xf32>
    %c38 = arith.constant 38 : index
    %201 = memref.load %arg2[%c38] : memref<64xf32, #tpu.memory_space<smem>>
    %202 = vector.broadcast %201 : f32 to vector<8x8xf32>
    %203 = arith.mulf %202, %22 : vector<8x8xf32>
    %204 = arith.addf %200, %203 : vector<8x8xf32>
    %c39 = arith.constant 39 : index
    %205 = memref.load %arg2[%c39] : memref<64xf32, #tpu.memory_space<smem>>
    %206 = vector.broadcast %205 : f32 to vector<8x8xf32>
    %207 = arith.mulf %206, %23 : vector<8x8xf32>
    %208 = arith.addf %204, %207 : vector<8x8xf32>
    %c40 = arith.constant 40 : index
    %209 = memref.load %arg2[%c40] : memref<64xf32, #tpu.memory_space<smem>>
    %210 = vector.broadcast %209 : f32 to vector<8x8xf32>
    %211 = arith.mulf %210, %27 : vector<8x8xf32>
    %212 = arith.addf %208, %211 : vector<8x8xf32>
    %c41 = arith.constant 41 : index
    %213 = memref.load %arg2[%c41] : memref<64xf32, #tpu.memory_space<smem>>
    %214 = vector.broadcast %213 : f32 to vector<8x8xf32>
    %215 = arith.mulf %214, %28 : vector<8x8xf32>
    %216 = arith.addf %212, %215 : vector<8x8xf32>
    %c42 = arith.constant 42 : index
    %217 = memref.load %arg2[%c42] : memref<64xf32, #tpu.memory_space<smem>>
    %218 = vector.broadcast %217 : f32 to vector<8x8xf32>
    %219 = arith.mulf %218, %30 : vector<8x8xf32>
    %220 = arith.addf %216, %219 : vector<8x8xf32>
    %c43 = arith.constant 43 : index
    %221 = memref.load %arg2[%c43] : memref<64xf32, #tpu.memory_space<smem>>
    %222 = vector.broadcast %221 : f32 to vector<8x8xf32>
    %223 = arith.mulf %222, %31 : vector<8x8xf32>
    %224 = arith.addf %220, %223 : vector<8x8xf32>
    %c44 = arith.constant 44 : index
    %225 = memref.load %arg2[%c44] : memref<64xf32, #tpu.memory_space<smem>>
    %226 = vector.broadcast %225 : f32 to vector<8x8xf32>
    %227 = arith.mulf %226, %35 : vector<8x8xf32>
    %228 = arith.addf %224, %227 : vector<8x8xf32>
    %c45 = arith.constant 45 : index
    %229 = memref.load %arg2[%c45] : memref<64xf32, #tpu.memory_space<smem>>
    %230 = vector.broadcast %229 : f32 to vector<8x8xf32>
    %231 = arith.mulf %230, %36 : vector<8x8xf32>
    %232 = arith.addf %228, %231 : vector<8x8xf32>
    %c46 = arith.constant 46 : index
    %233 = memref.load %arg2[%c46] : memref<64xf32, #tpu.memory_space<smem>>
    %234 = vector.broadcast %233 : f32 to vector<8x8xf32>
    %235 = arith.mulf %234, %38 : vector<8x8xf32>
    %236 = arith.addf %232, %235 : vector<8x8xf32>
    %c47 = arith.constant 47 : index
    %237 = memref.load %arg2[%c47] : memref<64xf32, #tpu.memory_space<smem>>
    %238 = vector.broadcast %237 : f32 to vector<8x8xf32>
    %239 = arith.mulf %238, %39 : vector<8x8xf32>
    %240 = arith.addf %236, %239 : vector<8x8xf32>
    %c0_62 = arith.constant 0 : index
    %c2_63 = arith.constant 2 : index
    %c0_64 = arith.constant 0 : index
    %c0_65 = arith.constant 0 : index
    %241 = vector.load %arg6[%c0_62, %c2_63, %c0_64, %c0_65] : memref<1x4x8x8xf32, #tpu.memory_space<vmem>>, vector<1x1x8x8xf32>
    %242 = vector.shape_cast %241 : vector<1x1x8x8xf32> to vector<8x8xf32>
    %243 = vector.shape_cast %240 : vector<8x8xf32> to vector<1x1x8x8xf32>
    tpu.vector_store %arg6[%c0_62, %c2_63, %c0_64, %c0_65], %243 {strides = array<i32>} : memref<1x4x8x8xf32, #tpu.memory_space<vmem>>, vector<1x1x8x8xf32>,
    %cst_66 = arith.constant 0.000000e+00 : f32
    %244 = vector.broadcast %cst_66 : f32 to vector<8x8xf32>
    %c48 = arith.constant 48 : index
    %245 = memref.load %arg2[%c48] : memref<64xf32, #tpu.memory_space<smem>>
    %246 = vector.broadcast %245 : f32 to vector<8x8xf32>
    %247 = arith.mulf %246, %11 : vector<8x8xf32>
    %248 = arith.addf %244, %247 : vector<8x8xf32>
    %c49 = arith.constant 49 : index
    %249 = memref.load %arg2[%c49] : memref<64xf32, #tpu.memory_space<smem>>
    %250 = vector.broadcast %249 : f32 to vector<8x8xf32>
    %251 = arith.mulf %250, %12 : vector<8x8xf32>
    %252 = arith.addf %248, %251 : vector<8x8xf32>
    %c50 = arith.constant 50 : index
    %253 = memref.load %arg2[%c50] : memref<64xf32, #tpu.memory_space<smem>>
    %254 = vector.broadcast %253 : f32 to vector<8x8xf32>
    %255 = arith.mulf %254, %14 : vector<8x8xf32>
    %256 = arith.addf %252, %255 : vector<8x8xf32>
    %c51 = arith.constant 51 : index
    %257 = memref.load %arg2[%c51] : memref<64xf32, #tpu.memory_space<smem>>
    %258 = vector.broadcast %257 : f32 to vector<8x8xf32>
    %259 = arith.mulf %258, %15 : vector<8x8xf32>
    %260 = arith.addf %256, %259 : vector<8x8xf32>
    %c52 = arith.constant 52 : index
    %261 = memref.load %arg2[%c52] : memref<64xf32, #tpu.memory_space<smem>>
    %262 = vector.broadcast %261 : f32 to vector<8x8xf32>
    %263 = arith.mulf %262, %19 : vector<8x8xf32>
    %264 = arith.addf %260, %263 : vector<8x8xf32>
    %c53 = arith.constant 53 : index
    %265 = memref.load %arg2[%c53] : memref<64xf32, #tpu.memory_space<smem>>
    %266 = vector.broadcast %265 : f32 to vector<8x8xf32>
    %267 = arith.mulf %266, %20 : vector<8x8xf32>
    %268 = arith.addf %264, %267 : vector<8x8xf32>
    %c54 = arith.constant 54 : index
    %269 = memref.load %arg2[%c54] : memref<64xf32, #tpu.memory_space<smem>>
    %270 = vector.broadcast %269 : f32 to vector<8x8xf32>
    %271 = arith.mulf %270, %22 : vector<8x8xf32>
    %272 = arith.addf %268, %271 : vector<8x8xf32>
    %c55 = arith.constant 55 : index
    %273 = memref.load %arg2[%c55] : memref<64xf32, #tpu.memory_space<smem>>
    %274 = vector.broadcast %273 : f32 to vector<8x8xf32>
    %275 = arith.mulf %274, %23 : vector<8x8xf32>
    %276 = arith.addf %272, %275 : vector<8x8xf32>
    %c56 = arith.constant 56 : index
    %277 = memref.load %arg2[%c56] : memref<64xf32, #tpu.memory_space<smem>>
    %278 = vector.broadcast %277 : f32 to vector<8x8xf32>
    %279 = arith.mulf %278, %27 : vector<8x8xf32>
    %280 = arith.addf %276, %279 : vector<8x8xf32>
    %c57 = arith.constant 57 : index
    %281 = memref.load %arg2[%c57] : memref<64xf32, #tpu.memory_space<smem>>
    %282 = vector.broadcast %281 : f32 to vector<8x8xf32>
    %283 = arith.mulf %282, %28 : vector<8x8xf32>
    %284 = arith.addf %280, %283 : vector<8x8xf32>
    %c58 = arith.constant 58 : index
    %285 = memref.load %arg2[%c58] : memref<64xf32, #tpu.memory_space<smem>>
    %286 = vector.broadcast %285 : f32 to vector<8x8xf32>
    %287 = arith.mulf %286, %30 : vector<8x8xf32>
    %288 = arith.addf %284, %287 : vector<8x8xf32>
    %c59 = arith.constant 59 : index
    %289 = memref.load %arg2[%c59] : memref<64xf32, #tpu.memory_space<smem>>
    %290 = vector.broadcast %289 : f32 to vector<8x8xf32>
    %291 = arith.mulf %290, %31 : vector<8x8xf32>
    %292 = arith.addf %288, %291 : vector<8x8xf32>
    %c60 = arith.constant 60 : index
    %293 = memref.load %arg2[%c60] : memref<64xf32, #tpu.memory_space<smem>>
    %294 = vector.broadcast %293 : f32 to vector<8x8xf32>
    %295 = arith.mulf %294, %35 : vector<8x8xf32>
    %296 = arith.addf %292, %295 : vector<8x8xf32>
    %c61 = arith.constant 61 : index
    %297 = memref.load %arg2[%c61] : memref<64xf32, #tpu.memory_space<smem>>
    %298 = vector.broadcast %297 : f32 to vector<8x8xf32>
    %299 = arith.mulf %298, %36 : vector<8x8xf32>
    %300 = arith.addf %296, %299 : vector<8x8xf32>
    %c62 = arith.constant 62 : index
    %301 = memref.load %arg2[%c62] : memref<64xf32, #tpu.memory_space<smem>>
    %302 = vector.broadcast %301 : f32 to vector<8x8xf32>
    %303 = arith.mulf %302, %38 : vector<8x8xf32>
    %304 = arith.addf %300, %303 : vector<8x8xf32>
    %c63 = arith.constant 63 : index
    %305 = memref.load %arg2[%c63] : memref<64xf32, #tpu.memory_space<smem>>
    %306 = vector.broadcast %305 : f32 to vector<8x8xf32>
    %307 = arith.mulf %306, %39 : vector<8x8xf32>
    %308 = arith.addf %304, %307 : vector<8x8xf32>
    %c0_67 = arith.constant 0 : index
    %c3_68 = arith.constant 3 : index
    %c0_69 = arith.constant 0 : index
    %c0_70 = arith.constant 0 : index
    %309 = vector.load %arg6[%c0_67, %c3_68, %c0_69, %c0_70] : memref<1x4x8x8xf32, #tpu.memory_space<vmem>>, vector<1x1x8x8xf32>
    %310 = vector.shape_cast %309 : vector<1x1x8x8xf32> to vector<8x8xf32>
    %311 = vector.shape_cast %308 : vector<8x8xf32> to vector<1x1x8x8xf32>
    tpu.vector_store %arg6[%c0_67, %c3_68, %c0_69, %c0_70], %311 {strides = array<i32>} : memref<1x4x8x8xf32, #tpu.memory_space<vmem>>, vector<1x1x8x8xf32>,
    return
  }
  func.func @transform_0(%arg0: i32, %arg1: i32) -> i32 {
    %c0_i32 = arith.constant 0 : i32
    %c0_i32_0 = arith.constant 0 : i32
    return %c0_i32 : i32
  }
  func.func @transform_1(%arg0: i32, %arg1: i32) -> (i32, i32, i32, i32) {
    %c0_i32 = arith.constant 0 : i32
    %c0_i32_0 = arith.constant 0 : i32
    %c0_i32_1 = arith.constant 0 : i32
    return %arg0, %c0_i32, %arg1, %c0_i32_0 : i32, i32, i32, i32
  }
  func.func @transform_2(%arg0: i32, %arg1: i32) -> (i32, i32, i32) {
    %c0_i32 = arith.constant 0 : i32
    %c0_i32_0 = arith.constant 0 : i32
    %c0_i32_1 = arith.constant 0 : i32
    %c0_i32_2 = arith.constant 0 : i32
    return %c0_i32, %c0_i32_0, %c0_i32_1 : i32, i32, i32
  }
  func.func @transform_3(%arg0: i32, %arg1: i32) -> (i32, i32, i32) {
    %c0_i32 = arith.constant 0 : i32
    %c0_i32_0 = arith.constant 0 : i32
    %c0_i32_1 = arith.constant 0 : i32
    %c0_i32_2 = arith.constant 0 : i32
    return %c0_i32, %c0_i32_0, %c0_i32_1 : i32, i32, i32
  }
  func.func @transform_4(%arg0: i32, %arg1: i32) -> (i32, i32, i32, i32) {
    %c0_i32 = arith.constant 0 : i32
    %c0_i32_0 = arith.constant 0 : i32
    %c0_i32_1 = arith.constant 0 : i32
    return %arg0, %c0_i32, %arg1, %c0_i32_0 : i32, i32, i32, i32
  }
}

</mosaic_0001>

<llo_original>
// kernel: tpu_custom_call.1
$region0: #{tpu_custom_call.1}
  #allocation0 [shape = 'u32[]', space=smem, size = 0x4, offset = 0x4, fixed_abs, tag = 'smem constant byte address 0x4 - core index']
  #allocation1 [shape = 'u32[144,128]{1,0:T(1,128)}', space=vmem, size = 0x12000, scoped, tag = 'internal scratch']
  %s0 = inlined_call_operand.vmem [shape: f32[64], index: 0, kind: input, shape index: {}]
  %s1 = inlined_call_operand.hbm [shape: f32[2,4,16,16], index: 1, kind: input, shape index: {}]
  %s2 = inlined_call_operand.vmem [shape: f32[2,8,16], index: 2, kind: input, shape index: {}]
  %s3 = inlined_call_operand.vmem [shape: f32[2,16,8], index: 3, kind: input, shape index: {}]
  %s4 = inlined_call_operand.hbm [shape: f32[2,4,8,8], index: 4, kind: output, shape index: {}]
  %s5 = sld [smem:[#allocation0]]
  $region57: #{tpu_custom_call.1} parent=0
    _
  %s7 = ssub.s32 1, %s5
  %s8 = scalar_select 0, %s7, %s5
  $region1: #{tpu_custom_call.1} parent=0
    #allocation2 [shape = 'u8[512]{0}', space=smem, size = 0x200, scoped, tag = 'input window, operand 0, single buffered']
    #allocation3 [shape = 's32[2]{0}', space=sflag, size = 0x8, scoped, tag = 'scoped memory for tpu_custom_call.1']
    #allocation4 [shape = 's32[2]{0}', space=sflag, size = 0x8, scoped, tag = 'scoped memory for tpu_custom_call.1']
    #allocation5 [shape = 's32[2]{0}', space=sflag, size = 0x8, scoped, tag = 'scoped memory for tpu_custom_call.1']
    #allocation6 [shape = 'u8[65536]{0}', space=vmem, size = 0x10000, scoped, tag = 'input window, operand 1']
    #allocation7 [shape = 'u8[32768]{0}', space=vmem, size = 0x8000, scoped, tag = 'output window, operand 0']
    %9 = vsyncpa [#allocation5], 0
    %10 = vsyncpa [#allocation3], 0
    %s11 = scalar_lea.sflag [#allocation3], 1
    %12 = vsyncpa %s11, 0
    %13 = vsyncpa [#allocation4], 0
    %s14 = scalar_lea.sflag [#allocation4], 1
    %15 = vsyncpa %s14, 0
    loop: start=0, step=1, limit=4
    $region2: #{tpu_custom_call.1} parent=1 // loop_pre_header
      _
    $region3: #{tpu_custom_call.1} parent=1 // loop_header
      %s17 = sphi 0, %s21
      %p18 = scmp.ge.s32.totalorder %s17, 4
      %s24 = sphi 0, %s36
      %s25 = sphi 0, %s32
      %s26 = sphi 0, %s24
      %s27 = sphi 0, %s25
      %s28 = sphi 0, %s26
      %s29 = sphi 0, %s27
      %s37 = sphi 0, %s37
      %s39 = sphi 0, %s37
      %s40 = sphi 0, %s39
      %s54 = sphi 0, %s40
      %s62 = sphi 0, %s64
      %s65 = sphi 0, %s62
      %s66 = sphi 0, %s65
      %s82 = sphi 0, %s66
      %s86 = sphi 0, %s86
      %s88 = sphi 0, %s86
      %s89 = sphi 0, %s88
      %s103 = sphi 0, %s89
      %s107 = sphi 0, %s107
      %s109 = sphi 0, %s107
      %s110 = sphi 0, %s109
      %s124 = sphi 0, %s110
      %s132 = sphi 0, %s134
      %s135 = sphi 0, %s132
      %s136 = sphi 0, %s135
      %s152 = sphi 0, %s136
    $region4: #{tpu_custom_call.1} parent=1 // loop_header_branch
      %20 = sbr.rel (%p18) target = $region8
    $region5: #{tpu_custom_call.1} parent=1 // loop_body
      %s22 = ssub.s32 %s17, 1
      %s23 = ssub.s32 %s17, 2
      %s30 = sadd.s32 1, %s25
      %p31 = scmp.ge.s32.totalorder %s30, 1
      %s32 = scalar_select %p31, 0, %s30
      %s33 = sadd.s32 1, %s24
      %s34 = scalar_select %p31, %s33, %s24
      %p35 = scmp.ge.s32.totalorder %s34, 2
      %s36 = scalar_select %p35, 0, %s34
      %s38 = sadd.s32 %s37, 1
      %p41 = scmp.eq.s32.totalorder %s17, 1
      %p42 = scmp.ne.s32.totalorder %s37, %s39
      %p43 = scmp.eq.s32.totalorder %s17, 0
      %p44 = por %p42, %p43
      %p45 = scmp.ne.s32.totalorder %s37, %s39
      %p46 = scmp.eq.s32.totalorder %s22, 1
      %p47 = por %p45, %p46
      %p48 = scmp.ne.s32.totalorder %s39, %s40
      %p49 = scmp.eq.s32.totalorder %s22, 0
      %p50 = por %p48, %p49
      %p51 = scmp.ne.s32.totalorder %s39, %s40
      %p52 = scmp.eq.s32.totalorder %s23, 1
      %p53 = por %p51, %p52
      %p55 = scmp.ne.s32.totalorder %s40, %s54
      %p56 = scmp.eq.s32.totalorder %s23, 0
      %p57 = por %p55, %p56
      %s58 = ssub.s32 %s24, %s36
      %s59 = ssub.s32 %s25, %s32
      %s60 = sor.u32 %s58, %s59
      %p61 = scmp.eq.s32.totalorder %s60, 0
      %s63 = sadd.s32 %s62, 1
      %s64 = scalar_select %p61, %s62, %s63
      %p67 = pneg %p61
      %p68 = scmp.eq.s32.totalorder %s17, 1
      %p69 = por %p67, %p68
      %p70 = scmp.ne.s32.totalorder %s62, %s65
      %p71 = scmp.eq.s32.totalorder %s17, 0
      %p72 = por %p70, %p71
      %p73 = scmp.ne.s32.totalorder %s62, %s65
      %p74 = scmp.eq.s32.totalorder %s22, 1
      %p75 = por %p73, %p74
      %p76 = scmp.ne.s32.totalorder %s65, %s66
      %p77 = scmp.eq.s32.totalorder %s22, 0
      %p78 = por %p76, %p77
      %p79 = scmp.ne.s32.totalorder %s65, %s66
      %p80 = scmp.eq.s32.totalorder %s23, 1
      %p81 = por %p79, %p80
      %p83 = scmp.ne.s32.totalorder %s66, %s82
      %p84 = scmp.eq.s32.totalorder %s23, 0
      %p85 = por %p83, %p84
      %s87 = sadd.s32 %s86, 1
      %p90 = scmp.eq.s32.totalorder %s17, 1
      %p91 = scmp.ne.s32.totalorder %s86, %s88
      %p92 = scmp.eq.s32.totalorder %s17, 0
      %p93 = por %p91, %p92
      %p94 = scmp.ne.s32.totalorder %s86, %s88
      %p95 = scmp.eq.s32.totalorder %s22, 1
      %p96 = por %p94, %p95
      %p97 = scmp.ne.s32.totalorder %s88, %s89
      %p98 = scmp.eq.s32.totalorder %s22, 0
      %p99 = por %p97, %p98
      %p100 = scmp.ne.s32.totalorder %s88, %s89
      %p101 = scmp.eq.s32.totalorder %s23, 1
      %p102 = por %p100, %p101
      %p104 = scmp.ne.s32.totalorder %s89, %s103
      %p105 = scmp.eq.s32.totalorder %s23, 0
      %p106 = por %p104, %p105
      %s108 = sadd.s32 %s107, 1
      %p111 = scmp.eq.s32.totalorder %s17, 1
      %p112 = scmp.ne.s32.totalorder %s107, %s109
      %p113 = scmp.eq.s32.totalorder %s17, 0
      %p114 = por %p112, %p113
      %p115 = scmp.ne.s32.totalorder %s107, %s109
      %p116 = scmp.eq.s32.totalorder %s22, 1
      %p117 = por %p115, %p116
      %p118 = scmp.ne.s32.totalorder %s109, %s110
      %p119 = scmp.eq.s32.totalorder %s22, 0
      %p120 = por %p118, %p119
      %p121 = scmp.ne.s32.totalorder %s109, %s110
      %p122 = scmp.eq.s32.totalorder %s23, 1
      %p123 = por %p121, %p122
      %p125 = scmp.ne.s32.totalorder %s110, %s124
      %p126 = scmp.eq.s32.totalorder %s23, 0
      %p127 = por %p125, %p126
      %s128 = ssub.s32 %s24, %s36
      %s129 = ssub.s32 %s25, %s32
      %s130 = sor.u32 %s128, %s129
      %p131 = scmp.eq.s32.totalorder %s130, 0
      %s133 = sadd.s32 %s132, 1
      %s134 = scalar_select %p131, %s132, %s133
      %p137 = pneg %p131
      %p138 = scmp.eq.s32.totalorder %s17, 1
      %p139 = por %p137, %p138
      %p140 = scmp.ne.s32.totalorder %s132, %s135
      %p141 = scmp.eq.s32.totalorder %s17, 0
      %p142 = por %p140, %p141
      %p143 = scmp.ne.s32.totalorder %s132, %s135
      %p144 = scmp.eq.s32.totalorder %s22, 1
      %p145 = por %p143, %p144
      %p146 = scmp.ne.s32.totalorder %s135, %s136
      %p147 = scmp.eq.s32.totalorder %s22, 0
      %p148 = por %p146, %p147
      %p149 = scmp.ne.s32.totalorder %s135, %s136
      %p150 = scmp.eq.s32.totalorder %s23, 1
      %p151 = por %p149, %p150
      %p153 = scmp.ne.s32.totalorder %s136, %s152
      %p154 = scmp.eq.s32.totalorder %s23, 0
      %p155 = por %p153, %p154
      %p156 = scmp.le.s32.totalorder 1, %s17
      %p157 = scmp.lt.s32.totalorder %s17, 3
      %p158 = pnand %p156, %p157
      %p159 = pneg %p158
      // Predicated region
      $region9: #{tpu_custom_call.1} parent=5 // pred_check
        _
      $region10: #{tpu_custom_call.1} parent=5 // pred_check_branch
        %161 = sbr.rel (%p158) target = $region12
      $region11: #{tpu_custom_call.1} parent=5 // pred_region
        %s162 = ssub.s32 %s17, 1
        // Predicated region
        $region13: #{tpu_custom_call.1} parent=11 // pred_check
          %p163 = pneg %p50
        $region14: #{tpu_custom_call.1} parent=11 // pred_check_branch
          %165 = sbr.rel (%p163) target = $region16
        $region15: #{tpu_custom_call.1} parent=11 // pred_region
          %s167 = ssub.s32 16, 16
          %168 = vsyncadd [#allocation5], %s167
          %s170 = sshll.u32 %s0, 4
          %s171 = int_to_ptr.vmem [resolvable:$true] %s170
          %173 = dma.vmem_to_smem %s171, 16, [#allocation2], [#allocation5]
        $region16: #{tpu_custom_call.1} parent=11 // pred_fallthru
          _
        // Predicated region
        $region17: #{tpu_custom_call.1} parent=11 // pred_check
          %p174 = pneg %p99
        $region18: #{tpu_custom_call.1} parent=11 // pred_check_branch
          %176 = sbr.rel (%p174) target = $region20
        $region19: #{tpu_custom_call.1} parent=11 // pred_region
          _
        $region20: #{tpu_custom_call.1} parent=11 // pred_fallthru
          _
        // Predicated region
        $region21: #{tpu_custom_call.1} parent=11 // pred_check
          %p177 = pneg %p120
        $region22: #{tpu_custom_call.1} parent=11 // pred_check_branch
          %179 = sbr.rel (%p177) target = $region24
        $region23: #{tpu_custom_call.1} parent=11 // pred_region
          _
        $region24: #{tpu_custom_call.1} parent=11 // pred_fallthru
          _
      $region12: #{tpu_custom_call.1} parent=5 // pred_fallthru
        _
      %p180 = scmp.lt.s32.totalorder %s17, 2
      // Predicated region
      $region25: #{tpu_custom_call.1} parent=5 // pred_check
        %p181 = pneg %p180
      $region26: #{tpu_custom_call.1} parent=5 // pred_check_branch
        %183 = sbr.rel (%p181) target = $region28
      $region27: #{tpu_custom_call.1} parent=5 // pred_region
        // Predicated region
        $region29: #{tpu_custom_call.1} parent=27 // pred_check
          %p184 = pneg %p72
        $region30: #{tpu_custom_call.1} parent=27 // pred_check_branch
          %186 = sbr.rel (%p184) target = $region32
        $region31: #{tpu_custom_call.1} parent=27 // pred_region
          %s187 = sand.u32 %s62, 1
          %s188 = scalar_lea.sflag [#allocation3], %s187
          %s189 = sand.u32 %s62, 1
          %s190 = smul.addr %s189, 64
          %s191 = scalar_lea.vmem [#allocation6], %s190
          %s192 = smul.u32 2, %s25
          %s194 = ssub.s32 1024, 1024
          %195 = vsyncadd %s188, %s194
          %s196 = smul.addr %s24, 8
          %s197 = sadd.s32 %s192, %s196
          %s198 = smul.addr %s197, 128
          %s199 = scalar_lea.hbm %s1, %s198
          %s200 = sshll.u32 %s191, 4
          %s201 = int_to_ptr.vmem [resolvable:$true] %s200
          %206 = dma.hbm_to_vmem [thread:$0]  %s199, 1024, %s201, %s188, 128, 128, 8
        $region32: #{tpu_custom_call.1} parent=27 // pred_fallthru
          _
      $region28: #{tpu_custom_call.1} parent=5 // pred_fallthru
        _
      %p207 = scmp.le.s32.totalorder 1, %s17
      %p208 = scmp.lt.s32.totalorder %s17, 3
      %p209 = pnand %p207, %p208
      %p210 = pneg %p209
      // Predicated region
      $region33: #{tpu_custom_call.1} parent=5 // pred_check
        _
      $region34: #{tpu_custom_call.1} parent=5 // pred_check_branch
        %212 = sbr.rel (%p209) target = $region36
      $region35: #{tpu_custom_call.1} parent=5 // pred_region
        %s213 = ssub.s32 %s17, 1
        // Predicated region
        $region37: #{tpu_custom_call.1} parent=35 // pred_check
          %p214 = pneg %p50
        $region38: #{tpu_custom_call.1} parent=35 // pred_check_branch
          %216 = sbr.rel (%p214) target = $region40
        $region39: #{tpu_custom_call.1} parent=35 // pred_region
          %217 = dma.done [#allocation5], 16
        $region40: #{tpu_custom_call.1} parent=35 // pred_fallthru
          _
        %s218 = sand.u32 %s65, 1
        %s219 = scalar_lea.sflag [#allocation3], %s218
        %s220 = sand.u32 %s65, 1
        %s221 = smul.addr %s220, 64
        %s222 = scalar_lea.vmem [#allocation6], %s221
        // Predicated region
        $region41: #{tpu_custom_call.1} parent=35 // pred_check
          %p223 = pneg %p78
        $region42: #{tpu_custom_call.1} parent=35 // pred_check_branch
          %225 = sbr.rel (%p223) target = $region44
        $region43: #{tpu_custom_call.1} parent=35 // pred_region
          %226 = dma.done %s219, 1024
        $region44: #{tpu_custom_call.1} parent=35 // pred_fallthru
          _
        %227 = sfence
        %p228 = pneg %p50
        %p229 = pneg %p47
        %s230 = sand.u32 %s65, 1
        %s231 = scalar_lea.sflag [#allocation3], %s230
        %s232 = sand.u32 %s65, 1
        %s233 = smul.addr %s232, 64
        %s234 = scalar_lea.vmem [#allocation6], %s233
        %p235 = pneg %p78
        %p236 = pneg %p75
        %p237 = pneg %p99
        %p238 = pneg %p96
        %p239 = pneg %p120
        %p240 = pneg %p117
        %p241 = pneg %p148
        %p242 = pneg %p145
        %s243 = sand.u32 %s135, 1
        %s244 = scalar_lea.sflag [#allocation4], %s243
        %s245 = sand.u32 %s135, 1
        %s246 = smul.addr %s245, 32
        %s247 = scalar_lea.vmem [#allocation7], %s246
        %s248 = smul.u32 2, %s27
        %v249 = vld [vmem:[%s2] sm:$0xff]
        %s250 = scalar_lea.vmem %s2, 8
        %v251 = vld [vmem:[%s250] sm:$0xff]
        %v252 = vld [vmem:[%s3] sm:$0xff]
        %v253 = vld [vmem:[%s3 + $0x8] sm:$0xff]
        %s254 = scalar_lea.vmem %s3, 16
        %v255 = vld [vmem:[%s254] sm:$0xff]
        %v256 = vld [vmem:[%s254 + $0x8] sm:$0xff]
        %v257 = vld [vmem:[%s222] sm:$0xff]
        %v258 = vld [vmem:[%s222 + $0x8] sm:$0xff]
        %vm259 = vcmask 130048
        %v261 = vsel %vm259, %v249, 0
        %263 = vmatprep.subr.mxu0 0.0
        %264 = vmatpush1.msra.mxu0 0.0
        %265 = vmatprep.subr.mxu0 0.0
        %266 = vmatpush1.msra.mxu0 0.0
        %267 = vmatprep.subr.mxu0 0.0
        %268 = vmatpush1.msra.mxu0 0.0
        %269 = vmatprep.subr.mxu0 0.0
        %270 = vmatpush1.msra.mxu0 0.0
        %271 = vmatprep.subr.mxu0 0.0
        %272 = vmatpush1.msra.mxu0 0.0
        %273 = vmatprep.subr.mxu0 0.0
        %274 = vmatpush1.msra.mxu0 0.0
        %275 = vmatprep.subr.mxu0 0.0
        %276 = vmatpush1.msra.mxu0 0.0
        %277 = vmatprep.subr.mxu0 0.0
        %278 = vmatpush1.msra.mxu0 0.0
        %279 = vmatprep.subr.mxu0 0.0
        %280 = vmatpush1.msra.mxu0 0.0
        %281 = vmatprep.subr.mxu0 0.0
        %282 = vmatpush1.msra.mxu0 0.0
        %283 = vmatprep.subr.mxu0 0.0
        %284 = vmatpush1.msra.mxu0 0.0
        %285 = vmatprep.subr.mxu0 0.0
        %286 = vmatpush1.msra.mxu0 0.0
        %287 = vmatprep.subr.mxu0 0.0
        %288 = vmatpush1.msra.mxu0 0.0
        %289 = vmatprep.subr.mxu0 0.0
        %290 = vmatpush1.msra.mxu0 0.0
        %291 = vmatprep.subr.mxu0 0.0
        %292 = vmatpush1.msra.mxu0 %v258
        %293 = vmatprep.subr.mxu0 0.0
        %294 = vmatpush1.msra.mxu0 %v257
        %295 = vmatprep.subr.mxu0 0.0
        %296 = vmatpush2.msra.mxu0 0.0
        %297 = vmatprep.subr.mxu0 0.0
        %298 = vmatpush2.msra.mxu0 0.0
        %299 = vmatprep.subr.mxu0 0.0
        %300 = vmatpush2.msra.mxu0 0.0
        %301 = vmatprep.subr.mxu0 0.0
        %302 = vmatpush2.msra.mxu0 0.0
        %303 = vmatprep.subr.mxu0 0.0
        %304 = vmatpush2.msra.mxu0 0.0
        %305 = vmatprep.subr.mxu0 0.0
        %306 = vmatpush2.msra.mxu0 0.0
        %307 = vmatprep.subr.mxu0 0.0
        %308 = vmatpush2.msra.mxu0 0.0
        %309 = vmatprep.subr.mxu0 0.0
        %310 = vmatpush2.msra.mxu0 0.0
        %311 = vmatprep.subr.mxu0 0.0
        %312 = vmatpush2.msra.mxu0 0.0
        %313 = vmatprep.subr.mxu0 0.0
        %314 = vmatpush2.msra.mxu0 0.0
        %315 = vmatprep.subr.mxu0 0.0
        %316 = vmatpush2.msra.mxu0 0.0
        %317 = vmatprep.subr.mxu0 0.0
        %318 = vmatpush2.msra.mxu0 0.0
        %319 = vmatprep.subr.mxu0 0.0
        %320 = vmatpush2.msra.mxu0 0.0
        %321 = vmatprep.subr.mxu0 0.0
        %322 = vmatpush2.msra.mxu0 0.0
        %323 = vmatprep.subr.mxu0 0.0
        %324 = vmatpush2.msra.mxu0 0.0
        %325 = vmatprep.subr.mxu0 0.0
        %326 = vmatpush2.msra.mxu0 0.0
        %327 = vmatprep.mubr.f32.mxu0 0.0
        %328 = vmatmul.mubr.f32.gmra.mxu0 %v261
        %v329 = vpop.f32.mrf.mxu0
        %v330 = vadd.f32 0.0, %v329
        %v331 = vpop.f32.mrf.mxu0
        %332 = vdwg.mxu0
        %v334 = vsel %vm259, %v330, 0
        %336 = vmatprep.subr.mxu0 0.0
        %337 = vmatpush1.msra.mxu0 0.0
        %338 = vmatprep.subr.mxu0 0.0
        %339 = vmatpush1.msra.mxu0 0.0
        %340 = vmatprep.subr.mxu0 0.0
        %341 = vmatpush1.msra.mxu0 0.0
        %342 = vmatprep.subr.mxu0 0.0
        %343 = vmatpush1.msra.mxu0 0.0
        %344 = vmatprep.subr.mxu0 0.0
        %345 = vmatpush1.msra.mxu0 0.0
        %346 = vmatprep.subr.mxu0 0.0
        %347 = vmatpush1.msra.mxu0 0.0
        %348 = vmatprep.subr.mxu0 0.0
        %349 = vmatpush1.msra.mxu0 0.0
        %350 = vmatprep.subr.mxu0 0.0
        %351 = vmatpush1.msra.mxu0 0.0
        %352 = vmatprep.subr.mxu0 0.0
        %353 = vmatpush1.msra.mxu0 0.0
        %354 = vmatprep.subr.mxu0 0.0
        %355 = vmatpush1.msra.mxu0 0.0
        %356 = vmatprep.subr.mxu0 0.0
        %357 = vmatpush1.msra.mxu0 0.0
        %358 = vmatprep.subr.mxu0 0.0
        %359 = vmatpush1.msra.mxu0 0.0
        %360 = vmatprep.subr.mxu0 0.0
        %361 = vmatpush1.msra.mxu0 0.0
        %362 = vmatprep.subr.mxu0 0.0
        %363 = vmatpush1.msra.mxu0 0.0
        %364 = vmatprep.subr.mxu0 0.0
        %365 = vmatpush1.msra.mxu0 %v253
        %366 = vmatprep.subr.mxu0 0.0
        %367 = vmatpush1.msra.mxu0 %v252
        %368 = vmatprep.subr.mxu0 0.0
        %369 = vmatpush2.msra.mxu0 0.0
        %370 = vmatprep.subr.mxu0 0.0
        %371 = vmatpush2.msra.mxu0 0.0
        %372 = vmatprep.subr.mxu0 0.0
        %373 = vmatpush2.msra.mxu0 0.0
        %374 = vmatprep.subr.mxu0 0.0
        %375 = vmatpush2.msra.mxu0 0.0
        %376 = vmatprep.subr.mxu0 0.0
        %377 = vmatpush2.msra.mxu0 0.0
        %378 = vmatprep.subr.mxu0 0.0
        %379 = vmatpush2.msra.mxu0 0.0
        %380 = vmatprep.subr.mxu0 0.0
        %381 = vmatpush2.msra.mxu0 0.0
        %382 = vmatprep.subr.mxu0 0.0
        %383 = vmatpush2.msra.mxu0 0.0
        %384 = vmatprep.subr.mxu0 0.0
        %385 = vmatpush2.msra.mxu0 0.0
        %386 = vmatprep.subr.mxu0 0.0
        %387 = vmatpush2.msra.mxu0 0.0
        %388 = vmatprep.subr.mxu0 0.0
        %389 = vmatpush2.msra.mxu0 0.0
        %390 = vmatprep.subr.mxu0 0.0
        %391 = vmatpush2.msra.mxu0 0.0
        %392 = vmatprep.subr.mxu0 0.0
        %393 = vmatpush2.msra.mxu0 0.0
        %394 = vmatprep.subr.mxu0 0.0
        %395 = vmatpush2.msra.mxu0 0.0
        %396 = vmatprep.subr.mxu0 0.0
        %397 = vmatpush2.msra.mxu0 0.0
        %398 = vmatprep.subr.mxu0 0.0
        %399 = vmatpush2.msra.mxu0 0.0
        %400 = vmatprep.mubr.f32.mxu0 0.0
        %401 = vmatmul.mubr.f32.gmra.mxu0 %v334
        %v402 = vpop.f32.mrf.mxu0
        %v403 = vadd.f32 0.0, %v402
        %v404 = vpop.f32.mrf.mxu0
        %405 = vdwg.mxu0
        %406 = vmatprep.subr.mxu0 0.0
        %407 = vmatpush1.msra.mxu0 0.0
        %408 = vmatprep.subr.mxu0 0.0
        %409 = vmatpush1.msra.mxu0 0.0
        %410 = vmatprep.subr.mxu0 0.0
        %411 = vmatpush1.msra.mxu0 0.0
        %412 = vmatprep.subr.mxu0 0.0
        %413 = vmatpush1.msra.mxu0 0.0
        %414 = vmatprep.subr.mxu0 0.0
        %415 = vmatpush1.msra.mxu0 0.0
        %416 = vmatprep.subr.mxu0 0.0
        %417 = vmatpush1.msra.mxu0 0.0
        %418 = vmatprep.subr.mxu0 0.0
        %419 = vmatpush1.msra.mxu0 0.0
        %420 = vmatprep.subr.mxu0 0.0
        %421 = vmatpush1.msra.mxu0 0.0
        %422 = vmatprep.subr.mxu0 0.0
        %423 = vmatpush1.msra.mxu0 0.0
        %424 = vmatprep.subr.mxu0 0.0
        %425 = vmatpush1.msra.mxu0 0.0
        %426 = vmatprep.subr.mxu0 0.0
        %427 = vmatpush1.msra.mxu0 0.0
        %428 = vmatprep.subr.mxu0 0.0
        %429 = vmatpush1.msra.mxu0 0.0
        %430 = vmatprep.subr.mxu0 0.0
        %431 = vmatpush1.msra.mxu0 0.0
        %432 = vmatprep.subr.mxu0 0.0
        %433 = vmatpush1.msra.mxu0 0.0
        %434 = vmatprep.subr.mxu0 0.0
        %435 = vmatpush1.msra.mxu0 %v256
        %436 = vmatprep.subr.mxu0 0.0
        %437 = vmatpush1.msra.mxu0 %v255
        %438 = vmatprep.subr.mxu0 0.0
        %439 = vmatpush2.msra.mxu0 0.0
        %440 = vmatprep.subr.mxu0 0.0
        %441 = vmatpush2.msra.mxu0 0.0
        %442 = vmatprep.subr.mxu0 0.0
        %443 = vmatpush2.msra.mxu0 0.0
        %444 = vmatprep.subr.mxu0 0.0
        %445 = vmatpush2.msra.mxu0 0.0
        %446 = vmatprep.subr.mxu0 0.0
        %447 = vmatpush2.msra.mxu0 0.0
        %448 = vmatprep.subr.mxu0 0.0
        %449 = vmatpush2.msra.mxu0 0.0
        %450 = vmatprep.subr.mxu0 0.0
        %451 = vmatpush2.msra.mxu0 0.0
        %452 = vmatprep.subr.mxu0 0.0
        %453 = vmatpush2.msra.mxu0 0.0
        %454 = vmatprep.subr.mxu0 0.0
        %455 = vmatpush2.msra.mxu0 0.0
        %456 = vmatprep.subr.mxu0 0.0
        %457 = vmatpush2.msra.mxu0 0.0
        %458 = vmatprep.subr.mxu0 0.0
        %459 = vmatpush2.msra.mxu0 0.0
        %460 = vmatprep.subr.mxu0 0.0
        %461 = vmatpush2.msra.mxu0 0.0
        %462 = vmatprep.subr.mxu0 0.0
        %463 = vmatpush2.msra.mxu0 0.0
        %464 = vmatprep.subr.mxu0 0.0
        %465 = vmatpush2.msra.mxu0 0.0
        %466 = vmatprep.subr.mxu0 0.0
        %467 = vmatpush2.msra.mxu0 0.0
        %468 = vmatprep.subr.mxu0 0.0
        %469 = vmatpush2.msra.mxu0 0.0
        %470 = vmatprep.mubr.f32.mxu0 0.0
        %471 = vmatmul.mubr.f32.gmra.mxu0 %v334
        %v472 = vpop.f32.mrf.mxu0
        %v473 = vadd.f32 0.0, %v472
        %v474 = vpop.f32.mrf.mxu0
        %475 = vdwg.mxu0
        %v477 = vsel %vm259, %v251, 0
        %479 = vmatprep.subr.mxu0 0.0
        %480 = vmatpush1.msra.mxu0 0.0
        %481 = vmatprep.subr.mxu0 0.0
        %482 = vmatpush1.msra.mxu0 0.0
        %483 = vmatprep.subr.mxu0 0.0
        %484 = vmatpush1.msra.mxu0 0.0
        %485 = vmatprep.subr.mxu0 0.0
        %486 = vmatpush1.msra.mxu0 0.0
        %487 = vmatprep.subr.mxu0 0.0
        %488 = vmatpush1.msra.mxu0 0.0
        %489 = vmatprep.subr.mxu0 0.0
        %490 = vmatpush1.msra.mxu0 0.0
        %491 = vmatprep.subr.mxu0 0.0
        %492 = vmatpush1.msra.mxu0 0.0
        %493 = vmatprep.subr.mxu0 0.0
        %494 = vmatpush1.msra.mxu0 0.0
        %495 = vmatprep.subr.mxu0 0.0
        %496 = vmatpush1.msra.mxu0 0.0
        %497 = vmatprep.subr.mxu0 0.0
        %498 = vmatpush1.msra.mxu0 0.0
        %499 = vmatprep.subr.mxu0 0.0
        %500 = vmatpush1.msra.mxu0 0.0
        %501 = vmatprep.subr.mxu0 0.0
        %502 = vmatpush1.msra.mxu0 0.0
        %503 = vmatprep.subr.mxu0 0.0
        %504 = vmatpush1.msra.mxu0 0.0
        %505 = vmatprep.subr.mxu0 0.0
        %506 = vmatpush1.msra.mxu0 0.0
        %507 = vmatprep.subr.mxu0 0.0
        %508 = vmatpush1.msra.mxu0 %v258
        %509 = vmatprep.subr.mxu0 0.0
        %510 = vmatpush1.msra.mxu0 %v257
        %511 = vmatprep.subr.mxu0 0.0
        %512 = vmatpush2.msra.mxu0 0.0
        %513 = vmatprep.subr.mxu0 0.0
        %514 = vmatpush2.msra.mxu0 0.0
        %515 = vmatprep.subr.mxu0 0.0
        %516 = vmatpush2.msra.mxu0 0.0
        %517 = vmatprep.subr.mxu0 0.0
        %518 = vmatpush2.msra.mxu0 0.0
        %519 = vmatprep.subr.mxu0 0.0
        %520 = vmatpush2.msra.mxu0 0.0
        %521 = vmatprep.subr.mxu0 0.0
        %522 = vmatpush2.msra.mxu0 0.0
        %523 = vmatprep.subr.mxu0 0.0
        %524 = vmatpush2.msra.mxu0 0.0
        %525 = vmatprep.subr.mxu0 0.0
        %526 = vmatpush2.msra.mxu0 0.0
        %527 = vmatprep.subr.mxu0 0.0
        %528 = vmatpush2.msra.mxu0 0.0
        %529 = vmatprep.subr.mxu0 0.0
        %530 = vmatpush2.msra.mxu0 0.0
        %531 = vmatprep.subr.mxu0 0.0
        %532 = vmatpush2.msra.mxu0 0.0
        %533 = vmatprep.subr.mxu0 0.0
        %534 = vmatpush2.msra.mxu0 0.0
        %535 = vmatprep.subr.mxu0 0.0
        %536 = vmatpush2.msra.mxu0 0.0
        %537 = vmatprep.subr.mxu0 0.0
        %538 = vmatpush2.msra.mxu0 0.0
        %539 = vmatprep.subr.mxu0 0.0
        %540 = vmatpush2.msra.mxu0 0.0
        %541 = vmatprep.subr.mxu0 0.0
        %542 = vmatpush2.msra.mxu0 0.0
        %543 = vmatprep.mubr.f32.mxu0 0.0
        %544 = vmatmul.mubr.f32.gmra.mxu0 %v477
        %v545 = vpop.f32.mrf.mxu0
        %v546 = vadd.f32 0.0, %v545
        %v547 = vpop.f32.mrf.mxu0
        %548 = vdwg.mxu0
        %v550 = vsel %vm259, %v546, 0
        %552 = vmatprep.subr.mxu0 0.0
        %553 = vmatpush1.msra.mxu0 0.0
        %554 = vmatprep.subr.mxu0 0.0
        %555 = vmatpush1.msra.mxu0 0.0
        %556 = vmatprep.subr.mxu0 0.0
        %557 = vmatpush1.msra.mxu0 0.0
        %558 = vmatprep.subr.mxu0 0.0
        %559 = vmatpush1.msra.mxu0 0.0
        %560 = vmatprep.subr.mxu0 0.0
        %561 = vmatpush1.msra.mxu0 0.0
        %562 = vmatprep.subr.mxu0 0.0
        %563 = vmatpush1.msra.mxu0 0.0
        %564 = vmatprep.subr.mxu0 0.0
        %565 = vmatpush1.msra.mxu0 0.0
        %566 = vmatprep.subr.mxu0 0.0
        %567 = vmatpush1.msra.mxu0 0.0
        %568 = vmatprep.subr.mxu0 0.0
        %569 = vmatpush1.msra.mxu0 0.0
        %570 = vmatprep.subr.mxu0 0.0
        %571 = vmatpush1.msra.mxu0 0.0
        %572 = vmatprep.subr.mxu0 0.0
        %573 = vmatpush1.msra.mxu0 0.0
        %574 = vmatprep.subr.mxu0 0.0
        %575 = vmatpush1.msra.mxu0 0.0
        %576 = vmatprep.subr.mxu0 0.0
        %577 = vmatpush1.msra.mxu0 0.0
        %578 = vmatprep.subr.mxu0 0.0
        %579 = vmatpush1.msra.mxu0 0.0
        %580 = vmatprep.subr.mxu0 0.0
        %581 = vmatpush1.msra.mxu0 %v253
        %582 = vmatprep.subr.mxu0 0.0
        %583 = vmatpush1.msra.mxu0 %v252
        %584 = vmatprep.subr.mxu0 0.0
        %585 = vmatpush2.msra.mxu0 0.0
        %586 = vmatprep.subr.mxu0 0.0
        %587 = vmatpush2.msra.mxu0 0.0
        %588 = vmatprep.subr.mxu0 0.0
        %589 = vmatpush2.msra.mxu0 0.0
        %590 = vmatprep.subr.mxu0 0.0
        %591 = vmatpush2.msra.mxu0 0.0
        %592 = vmatprep.subr.mxu0 0.0
        %593 = vmatpush2.msra.mxu0 0.0
        %594 = vmatprep.subr.mxu0 0.0
        %595 = vmatpush2.msra.mxu0 0.0
        %596 = vmatprep.subr.mxu0 0.0
        %597 = vmatpush2.msra.mxu0 0.0
        %598 = vmatprep.subr.mxu0 0.0
        %599 = vmatpush2.msra.mxu0 0.0
        %600 = vmatprep.subr.mxu0 0.0
        %601 = vmatpush2.msra.mxu0 0.0
        %602 = vmatprep.subr.mxu0 0.0
        %603 = vmatpush2.msra.mxu0 0.0
        %604 = vmatprep.subr.mxu0 0.0
        %605 = vmatpush2.msra.mxu0 0.0
        %606 = vmatprep.subr.mxu0 0.0
        %607 = vmatpush2.msra.mxu0 0.0
        %608 = vmatprep.subr.mxu0 0.0
        %609 = vmatpush2.msra.mxu0 0.0
        %610 = vmatprep.subr.mxu0 0.0
        %611 = vmatpush2.msra.mxu0 0.0
        %612 = vmatprep.subr.mxu0 0.0
        %613 = vmatpush2.msra.mxu0 0.0
        %614 = vmatprep.subr.mxu0 0.0
        %615 = vmatpush2.msra.mxu0 0.0
        %616 = vmatprep.mubr.f32.mxu0 0.0
        %617 = vmatmul.mubr.f32.gmra.mxu0 %v550
        %v618 = vpop.f32.mrf.mxu0
        %v619 = vadd.f32 0.0, %v618
        %v620 = vpop.f32.mrf.mxu0
        %621 = vdwg.mxu0
        %622 = vmatprep.subr.mxu0 0.0
        %623 = vmatpush1.msra.mxu0 0.0
        %624 = vmatprep.subr.mxu0 0.0
        %625 = vmatpush1.msra.mxu0 0.0
        %626 = vmatprep.subr.mxu0 0.0
        %627 = vmatpush1.msra.mxu0 0.0
        %628 = vmatprep.subr.mxu0 0.0
        %629 = vmatpush1.msra.mxu0 0.0
        %630 = vmatprep.subr.mxu0 0.0
        %631 = vmatpush1.msra.mxu0 0.0
        %632 = vmatprep.subr.mxu0 0.0
        %633 = vmatpush1.msra.mxu0 0.0
        %634 = vmatprep.subr.mxu0 0.0
        %635 = vmatpush1.msra.mxu0 0.0
        %636 = vmatprep.subr.mxu0 0.0
        %637 = vmatpush1.msra.mxu0 0.0
        %638 = vmatprep.subr.mxu0 0.0
        %639 = vmatpush1.msra.mxu0 0.0
        %640 = vmatprep.subr.mxu0 0.0
        %641 = vmatpush1.msra.mxu0 0.0
        %642 = vmatprep.subr.mxu0 0.0
        %643 = vmatpush1.msra.mxu0 0.0
        %644 = vmatprep.subr.mxu0 0.0
        %645 = vmatpush1.msra.mxu0 0.0
        %646 = vmatprep.subr.mxu0 0.0
        %647 = vmatpush1.msra.mxu0 0.0
        %648 = vmatprep.subr.mxu0 0.0
        %649 = vmatpush1.msra.mxu0 0.0
        %650 = vmatprep.subr.mxu0 0.0
        %651 = vmatpush1.msra.mxu0 %v256
        %652 = vmatprep.subr.mxu0 0.0
        %653 = vmatpush1.msra.mxu0 %v255
        %654 = vmatprep.subr.mxu0 0.0
        %655 = vmatpush2.msra.mxu0 0.0
        %656 = vmatprep.subr.mxu0 0.0
        %657 = vmatpush2.msra.mxu0 0.0
        %658 = vmatprep.subr.mxu0 0.0
        %659 = vmatpush2.msra.mxu0 0.0
        %660 = vmatprep.subr.mxu0 0.0
        %661 = vmatpush2.msra.mxu0 0.0
        %662 = vmatprep.subr.mxu0 0.0
        %663 = vmatpush2.msra.mxu0 0.0
        %664 = vmatprep.subr.mxu0 0.0
        %665 = vmatpush2.msra.mxu0 0.0
        %666 = vmatprep.subr.mxu0 0.0
        %667 = vmatpush2.msra.mxu0 0.0
        %668 = vmatprep.subr.mxu0 0.0
        %669 = vmatpush2.msra.mxu0 0.0
        %670 = vmatprep.subr.mxu0 0.0
        %671 = vmatpush2.msra.mxu0 0.0
        %672 = vmatprep.subr.mxu0 0.0
        %673 = vmatpush2.msra.mxu0 0.0
        %674 = vmatprep.subr.mxu0 0.0
        %675 = vmatpush2.msra.mxu0 0.0
        %676 = vmatprep.subr.mxu0 0.0
        %677 = vmatpush2.msra.mxu0 0.0
        %678 = vmatprep.subr.mxu0 0.0
        %679 = vmatpush2.msra.mxu0 0.0
        %680 = vmatprep.subr.mxu0 0.0
        %681 = vmatpush2.msra.mxu0 0.0
        %682 = vmatprep.subr.mxu0 0.0
        %683 = vmatpush2.msra.mxu0 0.0
        %684 = vmatprep.subr.mxu0 0.0
        %685 = vmatpush2.msra.mxu0 0.0
        %686 = vmatprep.mubr.f32.mxu0 0.0
        %687 = vmatmul.mubr.f32.gmra.mxu0 %v550
        %v688 = vpop.f32.mrf.mxu0
        %v689 = vadd.f32 0.0, %v688
        %v690 = vpop.f32.mrf.mxu0
        %691 = vdwg.mxu0
        %s692 = scalar_lea.vmem %s222, 16 [#allocation6]
        %v693 = vld [vmem:[%s692] sm:$0xff]
        %v694 = vld [vmem:[%s692 + $0x8] sm:$0xff]
        %695 = vmatprep.subr.mxu0 0.0
        %696 = vmatpush1.msra.mxu0 0.0
        %697 = vmatprep.subr.mxu0 0.0
        %698 = vmatpush1.msra.mxu0 0.0
        %699 = vmatprep.subr.mxu0 0.0
        %700 = vmatpush1.msra.mxu0 0.0
        %701 = vmatprep.subr.mxu0 0.0
        %702 = vmatpush1.msra.mxu0 0.0
        %703 = vmatprep.subr.mxu0 0.0
        %704 = vmatpush1.msra.mxu0 0.0
        %705 = vmatprep.subr.mxu0 0.0
        %706 = vmatpush1.msra.mxu0 0.0
        %707 = vmatprep.subr.mxu0 0.0
        %708 = vmatpush1.msra.mxu0 0.0
        %709 = vmatprep.subr.mxu0 0.0
        %710 = vmatpush1.msra.mxu0 0.0
        %711 = vmatprep.subr.mxu0 0.0
        %712 = vmatpush1.msra.mxu0 0.0
        %713 = vmatprep.subr.mxu0 0.0
        %714 = vmatpush1.msra.mxu0 0.0
        %715 = vmatprep.subr.mxu0 0.0
        %716 = vmatpush1.msra.mxu0 0.0
        %717 = vmatprep.subr.mxu0 0.0
        %718 = vmatpush1.msra.mxu0 0.0
        %719 = vmatprep.subr.mxu0 0.0
        %720 = vmatpush1.msra.mxu0 0.0
        %721 = vmatprep.subr.mxu0 0.0
        %722 = vmatpush1.msra.mxu0 0.0
        %723 = vmatprep.subr.mxu0 0.0
        %724 = vmatpush1.msra.mxu0 %v694
        %725 = vmatprep.subr.mxu0 0.0
        %726 = vmatpush1.msra.mxu0 %v693
        %727 = vmatprep.subr.mxu0 0.0
        %728 = vmatpush2.msra.mxu0 0.0
        %729 = vmatprep.subr.mxu0 0.0
        %730 = vmatpush2.msra.mxu0 0.0
        %731 = vmatprep.subr.mxu0 0.0
        %732 = vmatpush2.msra.mxu0 0.0
        %733 = vmatprep.subr.mxu0 0.0
        %734 = vmatpush2.msra.mxu0 0.0
        %735 = vmatprep.subr.mxu0 0.0
        %736 = vmatpush2.msra.mxu0 0.0
        %737 = vmatprep.subr.mxu0 0.0
        %738 = vmatpush2.msra.mxu0 0.0
        %739 = vmatprep.subr.mxu0 0.0
        %740 = vmatpush2.msra.mxu0 0.0
        %741 = vmatprep.subr.mxu0 0.0
        %742 = vmatpush2.msra.mxu0 0.0
        %743 = vmatprep.subr.mxu0 0.0
        %744 = vmatpush2.msra.mxu0 0.0
        %745 = vmatprep.subr.mxu0 0.0
        %746 = vmatpush2.msra.mxu0 0.0
        %747 = vmatprep.subr.mxu0 0.0
        %748 = vmatpush2.msra.mxu0 0.0
        %749 = vmatprep.subr.mxu0 0.0
        %750 = vmatpush2.msra.mxu0 0.0
        %751 = vmatprep.subr.mxu0 0.0
        %752 = vmatpush2.msra.mxu0 0.0
        %753 = vmatprep.subr.mxu0 0.0
        %754 = vmatpush2.msra.mxu0 0.0
        %755 = vmatprep.subr.mxu0 0.0
        %756 = vmatpush2.msra.mxu0 0.0
        %757 = vmatprep.subr.mxu0 0.0
        %758 = vmatpush2.msra.mxu0 0.0
        %759 = vmatprep.mubr.f32.mxu0 0.0
        %760 = vmatmul.mubr.f32.gmra.mxu0 %v261
        %v761 = vpop.f32.mrf.mxu0
        %v762 = vadd.f32 0.0, %v761
        %v763 = vpop.f32.mrf.mxu0
        %764 = vdwg.mxu0
        %v766 = vsel %vm259, %v762, 0
        %768 = vmatprep.subr.mxu0 0.0
        %769 = vmatpush1.msra.mxu0 0.0
        %770 = vmatprep.subr.mxu0 0.0
        %771 = vmatpush1.msra.mxu0 0.0
        %772 = vmatprep.subr.mxu0 0.0
        %773 = vmatpush1.msra.mxu0 0.0
        %774 = vmatprep.subr.mxu0 0.0
        %775 = vmatpush1.msra.mxu0 0.0
        %776 = vmatprep.subr.mxu0 0.0
        %777 = vmatpush1.msra.mxu0 0.0
        %778 = vmatprep.subr.mxu0 0.0
        %779 = vmatpush1.msra.mxu0 0.0
        %780 = vmatprep.subr.mxu0 0.0
        %781 = vmatpush1.msra.mxu0 0.0
        %782 = vmatprep.subr.mxu0 0.0
        %783 = vmatpush1.msra.mxu0 0.0
        %784 = vmatprep.subr.mxu0 0.0
        %785 = vmatpush1.msra.mxu0 0.0
        %786 = vmatprep.subr.mxu0 0.0
        %787 = vmatpush1.msra.mxu0 0.0
        %788 = vmatprep.subr.mxu0 0.0
        %789 = vmatpush1.msra.mxu0 0.0
        %790 = vmatprep.subr.mxu0 0.0
        %791 = vmatpush1.msra.mxu0 0.0
        %792 = vmatprep.subr.mxu0 0.0
        %793 = vmatpush1.msra.mxu0 0.0
        %794 = vmatprep.subr.mxu0 0.0
        %795 = vmatpush1.msra.mxu0 0.0
        %796 = vmatprep.subr.mxu0 0.0
        %797 = vmatpush1.msra.mxu0 %v253
        %798 = vmatprep.subr.mxu0 0.0
        %799 = vmatpush1.msra.mxu0 %v252
        %800 = vmatprep.subr.mxu0 0.0
        %801 = vmatpush2.msra.mxu0 0.0
        %802 = vmatprep.subr.mxu0 0.0
        %803 = vmatpush2.msra.mxu0 0.0
        %804 = vmatprep.subr.mxu0 0.0
        %805 = vmatpush2.msra.mxu0 0.0
        %806 = vmatprep.subr.mxu0 0.0
        %807 = vmatpush2.msra.mxu0 0.0
        %808 = vmatprep.subr.mxu0 0.0
        %809 = vmatpush2.msra.mxu0 0.0
        %810 = vmatprep.subr.mxu0 0.0
        %811 = vmatpush2.msra.mxu0 0.0
        %812 = vmatprep.subr.mxu0 0.0
        %813 = vmatpush2.msra.mxu0 0.0
        %814 = vmatprep.subr.mxu0 0.0
        %815 = vmatpush2.msra.mxu0 0.0
        %816 = vmatprep.subr.mxu0 0.0
        %817 = vmatpush2.msra.mxu0 0.0
        %818 = vmatprep.subr.mxu0 0.0
        %819 = vmatpush2.msra.mxu0 0.0
        %820 = vmatprep.subr.mxu0 0.0
        %821 = vmatpush2.msra.mxu0 0.0
        %822 = vmatprep.subr.mxu0 0.0
        %823 = vmatpush2.msra.mxu0 0.0
        %824 = vmatprep.subr.mxu0 0.0
        %825 = vmatpush2.msra.mxu0 0.0
        %826 = vmatprep.subr.mxu0 0.0
        %827 = vmatpush2.msra.mxu0 0.0
        %828 = vmatprep.subr.mxu0 0.0
        %829 = vmatpush2.msra.mxu0 0.0
        %830 = vmatprep.subr.mxu0 0.0
        %831 = vmatpush2.msra.mxu0 0.0
        %832 = vmatprep.mubr.f32.mxu0 0.0
        %833 = vmatmul.mubr.f32.gmra.mxu0 %v766
        %v834 = vpop.f32.mrf.mxu0
        %v835 = vadd.f32 0.0, %v834
        %v836 = vpop.f32.mrf.mxu0
        %837 = vdwg.mxu0
        %838 = vmatprep.subr.mxu0 0.0
        %839 = vmatpush1.msra.mxu0 0.0
        %840 = vmatprep.subr.mxu0 0.0
        %841 = vmatpush1.msra.mxu0 0.0
        %842 = vmatprep.subr.mxu0 0.0
        %843 = vmatpush1.msra.mxu0 0.0
        %844 = vmatprep.subr.mxu0 0.0
        %845 = vmatpush1.msra.mxu0 0.0
        %846 = vmatprep.subr.mxu0 0.0
        %847 = vmatpush1.msra.mxu0 0.0
        %848 = vmatprep.subr.mxu0 0.0
        %849 = vmatpush1.msra.mxu0 0.0
        %850 = vmatprep.subr.mxu0 0.0
        %851 = vmatpush1.msra.mxu0 0.0
        %852 = vmatprep.subr.mxu0 0.0
        %853 = vmatpush1.msra.mxu0 0.0
        %854 = vmatprep.subr.mxu0 0.0
        %855 = vmatpush1.msra.mxu0 0.0
        %856 = vmatprep.subr.mxu0 0.0
        %857 = vmatpush1.msra.mxu0 0.0
        %858 = vmatprep.subr.mxu0 0.0
        %859 = vmatpush1.msra.mxu0 0.0
        %860 = vmatprep.subr.mxu0 0.0
        %861 = vmatpush1.msra.mxu0 0.0
        %862 = vmatprep.subr.mxu0 0.0
        %863 = vmatpush1.msra.mxu0 0.0
        %864 = vmatprep.subr.mxu0 0.0
        %865 = vmatpush1.msra.mxu0 0.0
        %866 = vmatprep.subr.mxu0 0.0
        %867 = vmatpush1.msra.mxu0 %v256
        %868 = vmatprep.subr.mxu0 0.0
        %869 = vmatpush1.msra.mxu0 %v255
        %870 = vmatprep.subr.mxu0 0.0
        %871 = vmatpush2.msra.mxu0 0.0
        %872 = vmatprep.subr.mxu0 0.0
        %873 = vmatpush2.msra.mxu0 0.0
        %874 = vmatprep.subr.mxu0 0.0
        %875 = vmatpush2.msra.mxu0 0.0
        %876 = vmatprep.subr.mxu0 0.0
        %877 = vmatpush2.msra.mxu0 0.0
        %878 = vmatprep.subr.mxu0 0.0
        %879 = vmatpush2.msra.mxu0 0.0
        %880 = vmatprep.subr.mxu0 0.0
        %881 = vmatpush2.msra.mxu0 0.0
        %882 = vmatprep.subr.mxu0 0.0
        %883 = vmatpush2.msra.mxu0 0.0
        %884 = vmatprep.subr.mxu0 0.0
        %885 = vmatpush2.msra.mxu0 0.0
        %886 = vmatprep.subr.mxu0 0.0
        %887 = vmatpush2.msra.mxu0 0.0
        %888 = vmatprep.subr.mxu0 0.0
        %889 = vmatpush2.msra.mxu0 0.0
        %890 = vmatprep.subr.mxu0 0.0
        %891 = vmatpush2.msra.mxu0 0.0
        %892 = vmatprep.subr.mxu0 0.0
        %893 = vmatpush2.msra.mxu0 0.0
        %894 = vmatprep.subr.mxu0 0.0
        %895 = vmatpush2.msra.mxu0 0.0
        %896 = vmatprep.subr.mxu0 0.0
        %897 = vmatpush2.msra.mxu0 0.0
        %898 = vmatprep.subr.mxu0 0.0
        %899 = vmatpush2.msra.mxu0 0.0
        %900 = vmatprep.subr.mxu0 0.0
        %901 = vmatpush2.msra.mxu0 0.0
        %902 = vmatprep.mubr.f32.mxu0 0.0
        %903 = vmatmul.mubr.f32.gmra.mxu0 %v766
        %v904 = vpop.f32.mrf.mxu0
        %v905 = vadd.f32 0.0, %v904
        %v906 = vpop.f32.mrf.mxu0
        %907 = vdwg.mxu0
        %908 = vmatprep.subr.mxu0 0.0
        %909 = vmatpush1.msra.mxu0 0.0
        %910 = vmatprep.subr.mxu0 0.0
        %911 = vmatpush1.msra.mxu0 0.0
        %912 = vmatprep.subr.mxu0 0.0
        %913 = vmatpush1.msra.mxu0 0.0
        %914 = vmatprep.subr.mxu0 0.0
        %915 = vmatpush1.msra.mxu0 0.0
        %916 = vmatprep.subr.mxu0 0.0
        %917 = vmatpush1.msra.mxu0 0.0
        %918 = vmatprep.subr.mxu0 0.0
        %919 = vmatpush1.msra.mxu0 0.0
        %920 = vmatprep.subr.mxu0 0.0
        %921 = vmatpush1.msra.mxu0 0.0
        %922 = vmatprep.subr.mxu0 0.0
        %923 = vmatpush1.msra.mxu0 0.0
        %924 = vmatprep.subr.mxu0 0.0
        %925 = vmatpush1.msra.mxu0 0.0
        %926 = vmatprep.subr.mxu0 0.0
        %927 = vmatpush1.msra.mxu0 0.0
        %928 = vmatprep.subr.mxu0 0.0
        %929 = vmatpush1.msra.mxu0 0.0
        %930 = vmatprep.subr.mxu0 0.0
        %931 = vmatpush1.msra.mxu0 0.0
        %932 = vmatprep.subr.mxu0 0.0
        %933 = vmatpush1.msra.mxu0 0.0
        %934 = vmatprep.subr.mxu0 0.0
        %935 = vmatpush1.msra.mxu0 0.0
        %936 = vmatprep.subr.mxu0 0.0
        %937 = vmatpush1.msra.mxu0 %v694
        %938 = vmatprep.subr.mxu0 0.0
        %939 = vmatpush1.msra.mxu0 %v693
        %940 = vmatprep.subr.mxu0 0.0
        %941 = vmatpush2.msra.mxu0 0.0
        %942 = vmatprep.subr.mxu0 0.0
        %943 = vmatpush2.msra.mxu0 0.0
        %944 = vmatprep.subr.mxu0 0.0
        %945 = vmatpush2.msra.mxu0 0.0
        %946 = vmatprep.subr.mxu0 0.0
        %947 = vmatpush2.msra.mxu0 0.0
        %948 = vmatprep.subr.mxu0 0.0
        %949 = vmatpush2.msra.mxu0 0.0
        %950 = vmatprep.subr.mxu0 0.0
        %951 = vmatpush2.msra.mxu0 0.0
        %952 = vmatprep.subr.mxu0 0.0
        %953 = vmatpush2.msra.mxu0 0.0
        %954 = vmatprep.subr.mxu0 0.0
        %955 = vmatpush2.msra.mxu0 0.0
        %956 = vmatprep.subr.mxu0 0.0
        %957 = vmatpush2.msra.mxu0 0.0
        %958 = vmatprep.subr.mxu0 0.0
        %959 = vmatpush2.msra.mxu0 0.0
        %960 = vmatprep.subr.mxu0 0.0
        %961 = vmatpush2.msra.mxu0 0.0
        %962 = vmatprep.subr.mxu0 0.0
        %963 = vmatpush2.msra.mxu0 0.0
        %964 = vmatprep.subr.mxu0 0.0
        %965 = vmatpush2.msra.mxu0 0.0
        %966 = vmatprep.subr.mxu0 0.0
        %967 = vmatpush2.msra.mxu0 0.0
        %968 = vmatprep.subr.mxu0 0.0
        %969 = vmatpush2.msra.mxu0 0.0
        %970 = vmatprep.subr.mxu0 0.0
        %971 = vmatpush2.msra.mxu0 0.0
        %972 = vmatprep.mubr.f32.mxu0 0.0
        %973 = vmatmul.mubr.f32.gmra.mxu0 %v477
        %v974 = vpop.f32.mrf.mxu0
        %v975 = vadd.f32 0.0, %v974
        %v976 = vpop.f32.mrf.mxu0
        %977 = vdwg.mxu0
        %v979 = vsel %vm259, %v975, 0
        %981 = vmatprep.subr.mxu0 0.0
        %982 = vmatpush1.msra.mxu0 0.0
        %983 = vmatprep.subr.mxu0 0.0
        %984 = vmatpush1.msra.mxu0 0.0
        %985 = vmatprep.subr.mxu0 0.0
        %986 = vmatpush1.msra.mxu0 0.0
        %987 = vmatprep.subr.mxu0 0.0
        %988 = vmatpush1.msra.mxu0 0.0
        %989 = vmatprep.subr.mxu0 0.0
        %990 = vmatpush1.msra.mxu0 0.0
        %991 = vmatprep.subr.mxu0 0.0
        %992 = vmatpush1.msra.mxu0 0.0
        %993 = vmatprep.subr.mxu0 0.0
        %994 = vmatpush1.msra.mxu0 0.0
        %995 = vmatprep.subr.mxu0 0.0
        %996 = vmatpush1.msra.mxu0 0.0
        %997 = vmatprep.subr.mxu0 0.0
        %998 = vmatpush1.msra.mxu0 0.0
        %999 = vmatprep.subr.mxu0 0.0
        %1000 = vmatpush1.msra.mxu0 0.0
        %1001 = vmatprep.subr.mxu0 0.0
        %1002 = vmatpush1.msra.mxu0 0.0
        %1003 = vmatprep.subr.mxu0 0.0
        %1004 = vmatpush1.msra.mxu0 0.0
        %1005 = vmatprep.subr.mxu0 0.0
        %1006 = vmatpush1.msra.mxu0 0.0
        %1007 = vmatprep.subr.mxu0 0.0
        %1008 = vmatpush1.msra.mxu0 0.0
        %1009 = vmatprep.subr.mxu0 0.0
        %1010 = vmatpush1.msra.mxu0 %v253
        %1011 = vmatprep.subr.mxu0 0.0
        %1012 = vmatpush1.msra.mxu0 %v252
        %1013 = vmatprep.subr.mxu0 0.0
        %1014 = vmatpush2.msra.mxu0 0.0
        %1015 = vmatprep.subr.mxu0 0.0
        %1016 = vmatpush2.msra.mxu0 0.0
        %1017 = vmatprep.subr.mxu0 0.0
        %1018 = vmatpush2.msra.mxu0 0.0
        %1019 = vmatprep.subr.mxu0 0.0
        %1020 = vmatpush2.msra.mxu0 0.0
        %1021 = vmatprep.subr.mxu0 0.0
        %1022 = vmatpush2.msra.mxu0 0.0
        %1023 = vmatprep.subr.mxu0 0.0
        %1024 = vmatpush2.msra.mxu0 0.0
        %1025 = vmatprep.subr.mxu0 0.0
        %1026 = vmatpush2.msra.mxu0 0.0
        %1027 = vmatprep.subr.mxu0 0.0
        %1028 = vmatpush2.msra.mxu0 0.0
        %1029 = vmatprep.subr.mxu0 0.0
        %1030 = vmatpush2.msra.mxu0 0.0
        %1031 = vmatprep.subr.mxu0 0.0
        %1032 = vmatpush2.msra.mxu0 0.0
        %1033 = vmatprep.subr.mxu0 0.0
        %1034 = vmatpush2.msra.mxu0 0.0
        %1035 = vmatprep.subr.mxu0 0.0
        %1036 = vmatpush2.msra.mxu0 0.0
        %1037 = vmatprep.subr.mxu0 0.0
        %1038 = vmatpush2.msra.mxu0 0.0
        %1039 = vmatprep.subr.mxu0 0.0
        %1040 = vmatpush2.msra.mxu0 0.0
        %1041 = vmatprep.subr.mxu0 0.0
        %1042 = vmatpush2.msra.mxu0 0.0
        %1043 = vmatprep.subr.mxu0 0.0
        %1044 = vmatpush2.msra.mxu0 0.0
        %1045 = vmatprep.mubr.f32.mxu0 0.0
        %1046 = vmatmul.mubr.f32.gmra.mxu0 %v979
        %v1047 = vpop.f32.mrf.mxu0
        %v1048 = vadd.f32 0.0, %v1047
        %v1049 = vpop.f32.mrf.mxu0
        %1050 = vdwg.mxu0
        %1051 = vmatprep.subr.mxu0 0.0
        %1052 = vmatpush1.msra.mxu0 0.0
        %1053 = vmatprep.subr.mxu0 0.0
        %1054 = vmatpush1.msra.mxu0 0.0
        %1055 = vmatprep.subr.mxu0 0.0
        %1056 = vmatpush1.msra.mxu0 0.0
        %1057 = vmatprep.subr.mxu0 0.0
        %1058 = vmatpush1.msra.mxu0 0.0
        %1059 = vmatprep.subr.mxu0 0.0
        %1060 = vmatpush1.msra.mxu0 0.0
        %1061 = vmatprep.subr.mxu0 0.0
        %1062 = vmatpush1.msra.mxu0 0.0
        %1063 = vmatprep.subr.mxu0 0.0
        %1064 = vmatpush1.msra.mxu0 0.0
        %1065 = vmatprep.subr.mxu0 0.0
        %1066 = vmatpush1.msra.mxu0 0.0
        %1067 = vmatprep.subr.mxu0 0.0
        %1068 = vmatpush1.msra.mxu0 0.0
        %1069 = vmatprep.subr.mxu0 0.0
        %1070 = vmatpush1.msra.mxu0 0.0
        %1071 = vmatprep.subr.mxu0 0.0
        %1072 = vmatpush1.msra.mxu0 0.0
        %1073 = vmatprep.subr.mxu0 0.0
        %1074 = vmatpush1.msra.mxu0 0.0
        %1075 = vmatprep.subr.mxu0 0.0
        %1076 = vmatpush1.msra.mxu0 0.0
        %1077 = vmatprep.subr.mxu0 0.0
        %1078 = vmatpush1.msra.mxu0 0.0
        %1079 = vmatprep.subr.mxu0 0.0
        %1080 = vmatpush1.msra.mxu0 %v256
        %1081 = vmatprep.subr.mxu0 0.0
        %1082 = vmatpush1.msra.mxu0 %v255
        %1083 = vmatprep.subr.mxu0 0.0
        %1084 = vmatpush2.msra.mxu0 0.0
        %1085 = vmatprep.subr.mxu0 0.0
        %1086 = vmatpush2.msra.mxu0 0.0
        %1087 = vmatprep.subr.mxu0 0.0
        %1088 = vmatpush2.msra.mxu0 0.0
        %1089 = vmatprep.subr.mxu0 0.0
        %1090 = vmatpush2.msra.mxu0 0.0
        %1091 = vmatprep.subr.mxu0 0.0
        %1092 = vmatpush2.msra.mxu0 0.0
        %1093 = vmatprep.subr.mxu0 0.0
        %1094 = vmatpush2.msra.mxu0 0.0
        %1095 = vmatprep.subr.mxu0 0.0
        %1096 = vmatpush2.msra.mxu0 0.0
        %1097 = vmatprep.subr.mxu0 0.0
        %1098 = vmatpush2.msra.mxu0 0.0
        %1099 = vmatprep.subr.mxu0 0.0
        %1100 = vmatpush2.msra.mxu0 0.0
        %1101 = vmatprep.subr.mxu0 0.0
        %1102 = vmatpush2.msra.mxu0 0.0
        %1103 = vmatprep.subr.mxu0 0.0
        %1104 = vmatpush2.msra.mxu0 0.0
        %1105 = vmatprep.subr.mxu0 0.0
        %1106 = vmatpush2.msra.mxu0 0.0
        %1107 = vmatprep.subr.mxu0 0.0
        %1108 = vmatpush2.msra.mxu0 0.0
        %1109 = vmatprep.subr.mxu0 0.0
        %1110 = vmatpush2.msra.mxu0 0.0
        %1111 = vmatprep.subr.mxu0 0.0
        %1112 = vmatpush2.msra.mxu0 0.0
        %1113 = vmatprep.subr.mxu0 0.0
        %1114 = vmatpush2.msra.mxu0 0.0
        %1115 = vmatprep.mubr.f32.mxu0 0.0
        %1116 = vmatmul.mubr.f32.gmra.mxu0 %v979
        %v1117 = vpop.f32.mrf.mxu0
        %v1118 = vadd.f32 0.0, %v1117
        %v1119 = vpop.f32.mrf.mxu0
        %1120 = vdwg.mxu0
        %s1121 = scalar_lea.vmem %s222, 32 [#allocation6]
        %v1122 = vld [vmem:[%s1121] sm:$0xff]
        %v1123 = vld [vmem:[%s1121 + $0x8] sm:$0xff]
        %1124 = vmatprep.subr.mxu0 0.0
        %1125 = vmatpush1.msra.mxu0 0.0
        %1126 = vmatprep.subr.mxu0 0.0
        %1127 = vmatpush1.msra.mxu0 0.0
        %1128 = vmatprep.subr.mxu0 0.0
        %1129 = vmatpush1.msra.mxu0 0.0
        %1130 = vmatprep.subr.mxu0 0.0
        %1131 = vmatpush1.msra.mxu0 0.0
        %1132 = vmatprep.subr.mxu0 0.0
        %1133 = vmatpush1.msra.mxu0 0.0
        %1134 = vmatprep.subr.mxu0 0.0
        %1135 = vmatpush1.msra.mxu0 0.0
        %1136 = vmatprep.subr.mxu0 0.0
        %1137 = vmatpush1.msra.mxu0 0.0
        %1138 = vmatprep.subr.mxu0 0.0
        %1139 = vmatpush1.msra.mxu0 0.0
        %1140 = vmatprep.subr.mxu0 0.0
        %1141 = vmatpush1.msra.mxu0 0.0
        %1142 = vmatprep.subr.mxu0 0.0
        %1143 = vmatpush1.msra.mxu0 0.0
        %1144 = vmatprep.subr.mxu0 0.0
        %1145 = vmatpush1.msra.mxu0 0.0
        %1146 = vmatprep.subr.mxu0 0.0
        %1147 = vmatpush1.msra.mxu0 0.0
        %1148 = vmatprep.subr.mxu0 0.0
        %1149 = vmatpush1.msra.mxu0 0.0
        %1150 = vmatprep.subr.mxu0 0.0
        %1151 = vmatpush1.msra.mxu0 0.0
        %1152 = vmatprep.subr.mxu0 0.0
        %1153 = vmatpush1.msra.mxu0 %v1123
        %1154 = vmatprep.subr.mxu0 0.0
        %1155 = vmatpush1.msra.mxu0 %v1122
        %1156 = vmatprep.subr.mxu0 0.0
        %1157 = vmatpush2.msra.mxu0 0.0
        %1158 = vmatprep.subr.mxu0 0.0
        %1159 = vmatpush2.msra.mxu0 0.0
        %1160 = vmatprep.subr.mxu0 0.0
        %1161 = vmatpush2.msra.mxu0 0.0
        %1162 = vmatprep.subr.mxu0 0.0
        %1163 = vmatpush2.msra.mxu0 0.0
        %1164 = vmatprep.subr.mxu0 0.0
        %1165 = vmatpush2.msra.mxu0 0.0
        %1166 = vmatprep.subr.mxu0 0.0
        %1167 = vmatpush2.msra.mxu0 0.0
        %1168 = vmatprep.subr.mxu0 0.0
        %1169 = vmatpush2.msra.mxu0 0.0
        %1170 = vmatprep.subr.mxu0 0.0
        %1171 = vmatpush2.msra.mxu0 0.0
        %1172 = vmatprep.subr.mxu0 0.0
        %1173 = vmatpush2.msra.mxu0 0.0
        %1174 = vmatprep.subr.mxu0 0.0
        %1175 = vmatpush2.msra.mxu0 0.0
        %1176 = vmatprep.subr.mxu0 0.0
        %1177 = vmatpush2.msra.mxu0 0.0
        %1178 = vmatprep.subr.mxu0 0.0
        %1179 = vmatpush2.msra.mxu0 0.0
        %1180 = vmatprep.subr.mxu0 0.0
        %1181 = vmatpush2.msra.mxu0 0.0
        %1182 = vmatprep.subr.mxu0 0.0
        %1183 = vmatpush2.msra.mxu0 0.0
        %1184 = vmatprep.subr.mxu0 0.0
        %1185 = vmatpush2.msra.mxu0 0.0
        %1186 = vmatprep.subr.mxu0 0.0
        %1187 = vmatpush2.msra.mxu0 0.0
        %1188 = vmatprep.mubr.f32.mxu0 0.0
        %1189 = vmatmul.mubr.f32.gmra.mxu0 %v261
        %v1190 = vpop.f32.mrf.mxu0
        %v1191 = vadd.f32 0.0, %v1190
        %v1192 = vpop.f32.mrf.mxu0
        %1193 = vdwg.mxu0
        %v1195 = vsel %vm259, %v1191, 0
        %1197 = vmatprep.subr.mxu0 0.0
        %1198 = vmatpush1.msra.mxu0 0.0
        %1199 = vmatprep.subr.mxu0 0.0
        %1200 = vmatpush1.msra.mxu0 0.0
        %1201 = vmatprep.subr.mxu0 0.0
        %1202 = vmatpush1.msra.mxu0 0.0
        %1203 = vmatprep.subr.mxu0 0.0
        %1204 = vmatpush1.msra.mxu0 0.0
        %1205 = vmatprep.subr.mxu0 0.0
        %1206 = vmatpush1.msra.mxu0 0.0
        %1207 = vmatprep.subr.mxu0 0.0
        %1208 = vmatpush1.msra.mxu0 0.0
        %1209 = vmatprep.subr.mxu0 0.0
        %1210 = vmatpush1.msra.mxu0 0.0
        %1211 = vmatprep.subr.mxu0 0.0
        %1212 = vmatpush1.msra.mxu0 0.0
        %1213 = vmatprep.subr.mxu0 0.0
        %1214 = vmatpush1.msra.mxu0 0.0
        %1215 = vmatprep.subr.mxu0 0.0
        %1216 = vmatpush1.msra.mxu0 0.0
        %1217 = vmatprep.subr.mxu0 0.0
        %1218 = vmatpush1.msra.mxu0 0.0
        %1219 = vmatprep.subr.mxu0 0.0
        %1220 = vmatpush1.msra.mxu0 0.0
        %1221 = vmatprep.subr.mxu0 0.0
        %1222 = vmatpush1.msra.mxu0 0.0
        %1223 = vmatprep.subr.mxu0 0.0
        %1224 = vmatpush1.msra.mxu0 0.0
        %1225 = vmatprep.subr.mxu0 0.0
        %1226 = vmatpush1.msra.mxu0 %v253
        %1227 = vmatprep.subr.mxu0 0.0
        %1228 = vmatpush1.msra.mxu0 %v252
        %1229 = vmatprep.subr.mxu0 0.0
        %1230 = vmatpush2.msra.mxu0 0.0
        %1231 = vmatprep.subr.mxu0 0.0
        %1232 = vmatpush2.msra.mxu0 0.0
        %1233 = vmatprep.subr.mxu0 0.0
        %1234 = vmatpush2.msra.mxu0 0.0
        %1235 = vmatprep.subr.mxu0 0.0
        %1236 = vmatpush2.msra.mxu0 0.0
        %1237 = vmatprep.subr.mxu0 0.0
        %1238 = vmatpush2.msra.mxu0 0.0
        %1239 = vmatprep.subr.mxu0 0.0
        %1240 = vmatpush2.msra.mxu0 0.0
        %1241 = vmatprep.subr.mxu0 0.0
        %1242 = vmatpush2.msra.mxu0 0.0
        %1243 = vmatprep.subr.mxu0 0.0
        %1244 = vmatpush2.msra.mxu0 0.0
        %1245 = vmatprep.subr.mxu0 0.0
        %1246 = vmatpush2.msra.mxu0 0.0
        %1247 = vmatprep.subr.mxu0 0.0
        %1248 = vmatpush2.msra.mxu0 0.0
        %1249 = vmatprep.subr.mxu0 0.0
        %1250 = vmatpush2.msra.mxu0 0.0
        %1251 = vmatprep.subr.mxu0 0.0
        %1252 = vmatpush2.msra.mxu0 0.0
        %1253 = vmatprep.subr.mxu0 0.0
        %1254 = vmatpush2.msra.mxu0 0.0
        %1255 = vmatprep.subr.mxu0 0.0
        %1256 = vmatpush2.msra.mxu0 0.0
        %1257 = vmatprep.subr.mxu0 0.0
        %1258 = vmatpush2.msra.mxu0 0.0
        %1259 = vmatprep.subr.mxu0 0.0
        %1260 = vmatpush2.msra.mxu0 0.0
        %1261 = vmatprep.mubr.f32.mxu0 0.0
        %1262 = vmatmul.mubr.f32.gmra.mxu0 %v1195
        %v1263 = vpop.f32.mrf.mxu0
        %v1264 = vadd.f32 0.0, %v1263
        %v1265 = vpop.f32.mrf.mxu0
        %1266 = vdwg.mxu0
        %1267 = vmatprep.subr.mxu0 0.0
        %1268 = vmatpush1.msra.mxu0 0.0
        %1269 = vmatprep.subr.mxu0 0.0
        %1270 = vmatpush1.msra.mxu0 0.0
        %1271 = vmatprep.subr.mxu0 0.0
        %1272 = vmatpush1.msra.mxu0 0.0
        %1273 = vmatprep.subr.mxu0 0.0
        %1274 = vmatpush1.msra.mxu0 0.0
        %1275 = vmatprep.subr.mxu0 0.0
        %1276 = vmatpush1.msra.mxu0 0.0
        %1277 = vmatprep.subr.mxu0 0.0
        %1278 = vmatpush1.msra.mxu0 0.0
        %1279 = vmatprep.subr.mxu0 0.0
        %1280 = vmatpush1.msra.mxu0 0.0
        %1281 = vmatprep.subr.mxu0 0.0
        %1282 = vmatpush1.msra.mxu0 0.0
        %1283 = vmatprep.subr.mxu0 0.0
        %1284 = vmatpush1.msra.mxu0 0.0
        %1285 = vmatprep.subr.mxu0 0.0
        %1286 = vmatpush1.msra.mxu0 0.0
        %1287 = vmatprep.subr.mxu0 0.0
        %1288 = vmatpush1.msra.mxu0 0.0
        %1289 = vmatprep.subr.mxu0 0.0
        %1290 = vmatpush1.msra.mxu0 0.0
        %1291 = vmatprep.subr.mxu0 0.0
        %1292 = vmatpush1.msra.mxu0 0.0
        %1293 = vmatprep.subr.mxu0 0.0
        %1294 = vmatpush1.msra.mxu0 0.0
        %1295 = vmatprep.subr.mxu0 0.0
        %1296 = vmatpush1.msra.mxu0 %v256
        %1297 = vmatprep.subr.mxu0 0.0
        %1298 = vmatpush1.msra.mxu0 %v255
        %1299 = vmatprep.subr.mxu0 0.0
        %1300 = vmatpush2.msra.mxu0 0.0
        %1301 = vmatprep.subr.mxu0 0.0
        %1302 = vmatpush2.msra.mxu0 0.0
        %1303 = vmatprep.subr.mxu0 0.0
        %1304 = vmatpush2.msra.mxu0 0.0
        %1305 = vmatprep.subr.mxu0 0.0
        %1306 = vmatpush2.msra.mxu0 0.0
        %1307 = vmatprep.subr.mxu0 0.0
        %1308 = vmatpush2.msra.mxu0 0.0
        %1309 = vmatprep.subr.mxu0 0.0
        %1310 = vmatpush2.msra.mxu0 0.0
        %1311 = vmatprep.subr.mxu0 0.0
        %1312 = vmatpush2.msra.mxu0 0.0
        %1313 = vmatprep.subr.mxu0 0.0
        %1314 = vmatpush2.msra.mxu0 0.0
        %1315 = vmatprep.subr.mxu0 0.0
        %1316 = vmatpush2.msra.mxu0 0.0
        %1317 = vmatprep.subr.mxu0 0.0
        %1318 = vmatpush2.msra.mxu0 0.0
        %1319 = vmatprep.subr.mxu0 0.0
        %1320 = vmatpush2.msra.mxu0 0.0
        %1321 = vmatprep.subr.mxu0 0.0
        %1322 = vmatpush2.msra.mxu0 0.0
        %1323 = vmatprep.subr.mxu0 0.0
        %1324 = vmatpush2.msra.mxu0 0.0
        %1325 = vmatprep.subr.mxu0 0.0
        %1326 = vmatpush2.msra.mxu0 0.0
        %1327 = vmatprep.subr.mxu0 0.0
        %1328 = vmatpush2.msra.mxu0 0.0
        %1329 = vmatprep.subr.mxu0 0.0
        %1330 = vmatpush2.msra.mxu0 0.0
        %1331 = vmatprep.mubr.f32.mxu0 0.0
        %1332 = vmatmul.mubr.f32.gmra.mxu0 %v1195
        %v1333 = vpop.f32.mrf.mxu0
        %v1334 = vadd.f32 0.0, %v1333
        %v1335 = vpop.f32.mrf.mxu0
        %1336 = vdwg.mxu0
        %1337 = vmatprep.subr.mxu0 0.0
        %1338 = vmatpush1.msra.mxu0 0.0
        %1339 = vmatprep.subr.mxu0 0.0
        %1340 = vmatpush1.msra.mxu0 0.0
        %1341 = vmatprep.subr.mxu0 0.0
        %1342 = vmatpush1.msra.mxu0 0.0
        %1343 = vmatprep.subr.mxu0 0.0
        %1344 = vmatpush1.msra.mxu0 0.0
        %1345 = vmatprep.subr.mxu0 0.0
        %1346 = vmatpush1.msra.mxu0 0.0
        %1347 = vmatprep.subr.mxu0 0.0
        %1348 = vmatpush1.msra.mxu0 0.0
        %1349 = vmatprep.subr.mxu0 0.0
        %1350 = vmatpush1.msra.mxu0 0.0
        %1351 = vmatprep.subr.mxu0 0.0
        %1352 = vmatpush1.msra.mxu0 0.0
        %1353 = vmatprep.subr.mxu0 0.0
        %1354 = vmatpush1.msra.mxu0 0.0
        %1355 = vmatprep.subr.mxu0 0.0
        %1356 = vmatpush1.msra.mxu0 0.0
        %1357 = vmatprep.subr.mxu0 0.0
        %1358 = vmatpush1.msra.mxu0 0.0
        %1359 = vmatprep.subr.mxu0 0.0
        %1360 = vmatpush1.msra.mxu0 0.0
        %1361 = vmatprep.subr.mxu0 0.0
        %1362 = vmatpush1.msra.mxu0 0.0
        %1363 = vmatprep.subr.mxu0 0.0
        %1364 = vmatpush1.msra.mxu0 0.0
        %1365 = vmatprep.subr.mxu0 0.0
        %1366 = vmatpush1.msra.mxu0 %v1123
        %1367 = vmatprep.subr.mxu0 0.0
        %1368 = vmatpush1.msra.mxu0 %v1122
        %1369 = vmatprep.subr.mxu0 0.0
        %1370 = vmatpush2.msra.mxu0 0.0
        %1371 = vmatprep.subr.mxu0 0.0
        %1372 = vmatpush2.msra.mxu0 0.0
        %1373 = vmatprep.subr.mxu0 0.0
        %1374 = vmatpush2.msra.mxu0 0.0
        %1375 = vmatprep.subr.mxu0 0.0
        %1376 = vmatpush2.msra.mxu0 0.0
        %1377 = vmatprep.subr.mxu0 0.0
        %1378 = vmatpush2.msra.mxu0 0.0
        %1379 = vmatprep.subr.mxu0 0.0
        %1380 = vmatpush2.msra.mxu0 0.0
        %1381 = vmatprep.subr.mxu0 0.0
        %1382 = vmatpush2.msra.mxu0 0.0
        %1383 = vmatprep.subr.mxu0 0.0
        %1384 = vmatpush2.msra.mxu0 0.0
        %1385 = vmatprep.subr.mxu0 0.0
        %1386 = vmatpush2.msra.mxu0 0.0
        %1387 = vmatprep.subr.mxu0 0.0
        %1388 = vmatpush2.msra.mxu0 0.0
        %1389 = vmatprep.subr.mxu0 0.0
        %1390 = vmatpush2.msra.mxu0 0.0
        %1391 = vmatprep.subr.mxu0 0.0
        %1392 = vmatpush2.msra.mxu0 0.0
        %1393 = vmatprep.subr.mxu0 0.0
        %1394 = vmatpush2.msra.mxu0 0.0
        %1395 = vmatprep.subr.mxu0 0.0
        %1396 = vmatpush2.msra.mxu0 0.0
        %1397 = vmatprep.subr.mxu0 0.0
        %1398 = vmatpush2.msra.mxu0 0.0
        %1399 = vmatprep.subr.mxu0 0.0
        %1400 = vmatpush2.msra.mxu0 0.0
        %1401 = vmatprep.mubr.f32.mxu0 0.0
        %1402 = vmatmul.mubr.f32.gmra.mxu0 %v477
        %v1403 = vpop.f32.mrf.mxu0
        %v1404 = vadd.f32 0.0, %v1403
        %v1405 = vpop.f32.mrf.mxu0
        %1406 = vdwg.mxu0
        %v1408 = vsel %vm259, %v1404, 0
        %1410 = vmatprep.subr.mxu0 0.0
        %1411 = vmatpush1.msra.mxu0 0.0
        %1412 = vmatprep.subr.mxu0 0.0
        %1413 = vmatpush1.msra.mxu0 0.0
        %1414 = vmatprep.subr.mxu0 0.0
        %1415 = vmatpush1.msra.mxu0 0.0
        %1416 = vmatprep.subr.mxu0 0.0
        %1417 = vmatpush1.msra.mxu0 0.0
        %1418 = vmatprep.subr.mxu0 0.0
        %1419 = vmatpush1.msra.mxu0 0.0
        %1420 = vmatprep.subr.mxu0 0.0
        %1421 = vmatpush1.msra.mxu0 0.0
        %1422 = vmatprep.subr.mxu0 0.0
        %1423 = vmatpush1.msra.mxu0 0.0
        %1424 = vmatprep.subr.mxu0 0.0
        %1425 = vmatpush1.msra.mxu0 0.0
        %1426 = vmatprep.subr.mxu0 0.0
        %1427 = vmatpush1.msra.mxu0 0.0
        %1428 = vmatprep.subr.mxu0 0.0
        %1429 = vmatpush1.msra.mxu0 0.0
        %1430 = vmatprep.subr.mxu0 0.0
        %1431 = vmatpush1.msra.mxu0 0.0
        %1432 = vmatprep.subr.mxu0 0.0
        %1433 = vmatpush1.msra.mxu0 0.0
        %1434 = vmatprep.subr.mxu0 0.0
        %1435 = vmatpush1.msra.mxu0 0.0
        %1436 = vmatprep.subr.mxu0 0.0
        %1437 = vmatpush1.msra.mxu0 0.0
        %1438 = vmatprep.subr.mxu0 0.0
        %1439 = vmatpush1.msra.mxu0 %v253
        %1440 = vmatprep.subr.mxu0 0.0
        %1441 = vmatpush1.msra.mxu0 %v252
        %1442 = vmatprep.subr.mxu0 0.0
        %1443 = vmatpush2.msra.mxu0 0.0
        %1444 = vmatprep.subr.mxu0 0.0
        %1445 = vmatpush2.msra.mxu0 0.0
        %1446 = vmatprep.subr.mxu0 0.0
        %1447 = vmatpush2.msra.mxu0 0.0
        %1448 = vmatprep.subr.mxu0 0.0
        %1449 = vmatpush2.msra.mxu0 0.0
        %1450 = vmatprep.subr.mxu0 0.0
        %1451 = vmatpush2.msra.mxu0 0.0
        %1452 = vmatprep.subr.mxu0 0.0
        %1453 = vmatpush2.msra.mxu0 0.0
        %1454 = vmatprep.subr.mxu0 0.0
        %1455 = vmatpush2.msra.mxu0 0.0
        %1456 = vmatprep.subr.mxu0 0.0
        %1457 = vmatpush2.msra.mxu0 0.0
        %1458 = vmatprep.subr.mxu0 0.0
        %1459 = vmatpush2.msra.mxu0 0.0
        %1460 = vmatprep.subr.mxu0 0.0
        %1461 = vmatpush2.msra.mxu0 0.0
        %1462 = vmatprep.subr.mxu0 0.0
        %1463 = vmatpush2.msra.mxu0 0.0
        %1464 = vmatprep.subr.mxu0 0.0
        %1465 = vmatpush2.msra.mxu0 0.0
        %1466 = vmatprep.subr.mxu0 0.0
        %1467 = vmatpush2.msra.mxu0 0.0
        %1468 = vmatprep.subr.mxu0 0.0
        %1469 = vmatpush2.msra.mxu0 0.0
        %1470 = vmatprep.subr.mxu0 0.0
        %1471 = vmatpush2.msra.mxu0 0.0
        %1472 = vmatprep.subr.mxu0 0.0
        %1473 = vmatpush2.msra.mxu0 0.0
        %1474 = vmatprep.mubr.f32.mxu0 0.0
        %1475 = vmatmul.mubr.f32.gmra.mxu0 %v1408
        %v1476 = vpop.f32.mrf.mxu0
        %v1477 = vadd.f32 0.0, %v1476
        %v1478 = vpop.f32.mrf.mxu0
        %1479 = vdwg.mxu0
        %1480 = vmatprep.subr.mxu0 0.0
        %1481 = vmatpush1.msra.mxu0 0.0
        %1482 = vmatprep.subr.mxu0 0.0
        %1483 = vmatpush1.msra.mxu0 0.0
        %1484 = vmatprep.subr.mxu0 0.0
        %1485 = vmatpush1.msra.mxu0 0.0
        %1486 = vmatprep.subr.mxu0 0.0
        %1487 = vmatpush1.msra.mxu0 0.0
        %1488 = vmatprep.subr.mxu0 0.0
        %1489 = vmatpush1.msra.mxu0 0.0
        %1490 = vmatprep.subr.mxu0 0.0
        %1491 = vmatpush1.msra.mxu0 0.0
        %1492 = vmatprep.subr.mxu0 0.0
        %1493 = vmatpush1.msra.mxu0 0.0
        %1494 = vmatprep.subr.mxu0 0.0
        %1495 = vmatpush1.msra.mxu0 0.0
        %1496 = vmatprep.subr.mxu0 0.0
        %1497 = vmatpush1.msra.mxu0 0.0
        %1498 = vmatprep.subr.mxu0 0.0
        %1499 = vmatpush1.msra.mxu0 0.0
        %1500 = vmatprep.subr.mxu0 0.0
        %1501 = vmatpush1.msra.mxu0 0.0
        %1502 = vmatprep.subr.mxu0 0.0
        %1503 = vmatpush1.msra.mxu0 0.0
        %1504 = vmatprep.subr.mxu0 0.0
        %1505 = vmatpush1.msra.mxu0 0.0
        %1506 = vmatprep.subr.mxu0 0.0
        %1507 = vmatpush1.msra.mxu0 0.0
        %1508 = vmatprep.subr.mxu0 0.0
        %1509 = vmatpush1.msra.mxu0 %v256
        %1510 = vmatprep.subr.mxu0 0.0
        %1511 = vmatpush1.msra.mxu0 %v255
        %1512 = vmatprep.subr.mxu0 0.0
        %1513 = vmatpush2.msra.mxu0 0.0
        %1514 = vmatprep.subr.mxu0 0.0
        %1515 = vmatpush2.msra.mxu0 0.0
        %1516 = vmatprep.subr.mxu0 0.0
        %1517 = vmatpush2.msra.mxu0 0.0
        %1518 = vmatprep.subr.mxu0 0.0
        %1519 = vmatpush2.msra.mxu0 0.0
        %1520 = vmatprep.subr.mxu0 0.0
        %1521 = vmatpush2.msra.mxu0 0.0
        %1522 = vmatprep.subr.mxu0 0.0
        %1523 = vmatpush2.msra.mxu0 0.0
        %1524 = vmatprep.subr.mxu0 0.0
        %1525 = vmatpush2.msra.mxu0 0.0
        %1526 = vmatprep.subr.mxu0 0.0
        %1527 = vmatpush2.msra.mxu0 0.0
        %1528 = vmatprep.subr.mxu0 0.0
        %1529 = vmatpush2.msra.mxu0 0.0
        %1530 = vmatprep.subr.mxu0 0.0
        %1531 = vmatpush2.msra.mxu0 0.0
        %1532 = vmatprep.subr.mxu0 0.0
        %1533 = vmatpush2.msra.mxu0 0.0
        %1534 = vmatprep.subr.mxu0 0.0
        %1535 = vmatpush2.msra.mxu0 0.0
        %1536 = vmatprep.subr.mxu0 0.0
        %1537 = vmatpush2.msra.mxu0 0.0
        %1538 = vmatprep.subr.mxu0 0.0
        %1539 = vmatpush2.msra.mxu0 0.0
        %1540 = vmatprep.subr.mxu0 0.0
        %1541 = vmatpush2.msra.mxu0 0.0
        %1542 = vmatprep.subr.mxu0 0.0
        %1543 = vmatpush2.msra.mxu0 0.0
        %1544 = vmatprep.mubr.f32.mxu0 0.0
        %1545 = vmatmul.mubr.f32.gmra.mxu0 %v1408
        %v1546 = vpop.f32.mrf.mxu0
        %v1547 = vadd.f32 0.0, %v1546
        %v1548 = vpop.f32.mrf.mxu0
        %1549 = vdwg.mxu0
        %s1550 = scalar_lea.vmem %s222, 48 [#allocation6]
        %v1551 = vld [vmem:[%s1550] sm:$0xff]
        %v1552 = vld [vmem:[%s1550 + $0x8] sm:$0xff]
        %1553 = vmatprep.subr.mxu0 0.0
        %1554 = vmatpush1.msra.mxu0 0.0
        %1555 = vmatprep.subr.mxu0 0.0
        %1556 = vmatpush1.msra.mxu0 0.0
        %1557 = vmatprep.subr.mxu0 0.0
        %1558 = vmatpush1.msra.mxu0 0.0
        %1559 = vmatprep.subr.mxu0 0.0
        %1560 = vmatpush1.msra.mxu0 0.0
        %1561 = vmatprep.subr.mxu0 0.0
        %1562 = vmatpush1.msra.mxu0 0.0
        %1563 = vmatprep.subr.mxu0 0.0
        %1564 = vmatpush1.msra.mxu0 0.0
        %1565 = vmatprep.subr.mxu0 0.0
        %1566 = vmatpush1.msra.mxu0 0.0
        %1567 = vmatprep.subr.mxu0 0.0
        %1568 = vmatpush1.msra.mxu0 0.0
        %1569 = vmatprep.subr.mxu0 0.0
        %1570 = vmatpush1.msra.mxu0 0.0
        %1571 = vmatprep.subr.mxu0 0.0
        %1572 = vmatpush1.msra.mxu0 0.0
        %1573 = vmatprep.subr.mxu0 0.0
        %1574 = vmatpush1.msra.mxu0 0.0
        %1575 = vmatprep.subr.mxu0 0.0
        %1576 = vmatpush1.msra.mxu0 0.0
        %1577 = vmatprep.subr.mxu0 0.0
        %1578 = vmatpush1.msra.mxu0 0.0
        %1579 = vmatprep.subr.mxu0 0.0
        %1580 = vmatpush1.msra.mxu0 0.0
        %1581 = vmatprep.subr.mxu0 0.0
        %1582 = vmatpush1.msra.mxu0 %v1552
        %1583 = vmatprep.subr.mxu0 0.0
        %1584 = vmatpush1.msra.mxu0 %v1551
        %1585 = vmatprep.subr.mxu0 0.0
        %1586 = vmatpush2.msra.mxu0 0.0
        %1587 = vmatprep.subr.mxu0 0.0
        %1588 = vmatpush2.msra.mxu0 0.0
        %1589 = vmatprep.subr.mxu0 0.0
        %1590 = vmatpush2.msra.mxu0 0.0
        %1591 = vmatprep.subr.mxu0 0.0
        %1592 = vmatpush2.msra.mxu0 0.0
        %1593 = vmatprep.subr.mxu0 0.0
        %1594 = vmatpush2.msra.mxu0 0.0
        %1595 = vmatprep.subr.mxu0 0.0
        %1596 = vmatpush2.msra.mxu0 0.0
        %1597 = vmatprep.subr.mxu0 0.0
        %1598 = vmatpush2.msra.mxu0 0.0
        %1599 = vmatprep.subr.mxu0 0.0
        %1600 = vmatpush2.msra.mxu0 0.0
        %1601 = vmatprep.subr.mxu0 0.0
        %1602 = vmatpush2.msra.mxu0 0.0
        %1603 = vmatprep.subr.mxu0 0.0
        %1604 = vmatpush2.msra.mxu0 0.0
        %1605 = vmatprep.subr.mxu0 0.0
        %1606 = vmatpush2.msra.mxu0 0.0
        %1607 = vmatprep.subr.mxu0 0.0
        %1608 = vmatpush2.msra.mxu0 0.0
        %1609 = vmatprep.subr.mxu0 0.0
        %1610 = vmatpush2.msra.mxu0 0.0
        %1611 = vmatprep.subr.mxu0 0.0
        %1612 = vmatpush2.msra.mxu0 0.0
        %1613 = vmatprep.subr.mxu0 0.0
        %1614 = vmatpush2.msra.mxu0 0.0
        %1615 = vmatprep.subr.mxu0 0.0
        %1616 = vmatpush2.msra.mxu0 0.0
        %1617 = vmatprep.mubr.f32.mxu0 0.0
        %1618 = vmatmul.mubr.f32.gmra.mxu0 %v261
        %v1619 = vpop.f32.mrf.mxu0
        %v1620 = vadd.f32 0.0, %v1619
        %v1621 = vpop.f32.mrf.mxu0
        %1622 = vdwg.mxu0
        %v1624 = vsel %vm259, %v1620, 0
        %1626 = vmatprep.subr.mxu0 0.0
        %1627 = vmatpush1.msra.mxu0 0.0
        %1628 = vmatprep.subr.mxu0 0.0
        %1629 = vmatpush1.msra.mxu0 0.0
        %1630 = vmatprep.subr.mxu0 0.0
        %1631 = vmatpush1.msra.mxu0 0.0
        %1632 = vmatprep.subr.mxu0 0.0
        %1633 = vmatpush1.msra.mxu0 0.0
        %1634 = vmatprep.subr.mxu0 0.0
        %1635 = vmatpush1.msra.mxu0 0.0
        %1636 = vmatprep.subr.mxu0 0.0
        %1637 = vmatpush1.msra.mxu0 0.0
        %1638 = vmatprep.subr.mxu0 0.0
        %1639 = vmatpush1.msra.mxu0 0.0
        %1640 = vmatprep.subr.mxu0 0.0
        %1641 = vmatpush1.msra.mxu0 0.0
        %1642 = vmatprep.subr.mxu0 0.0
        %1643 = vmatpush1.msra.mxu0 0.0
        %1644 = vmatprep.subr.mxu0 0.0
        %1645 = vmatpush1.msra.mxu0 0.0
        %1646 = vmatprep.subr.mxu0 0.0
        %1647 = vmatpush1.msra.mxu0 0.0
        %1648 = vmatprep.subr.mxu0 0.0
        %1649 = vmatpush1.msra.mxu0 0.0
        %1650 = vmatprep.subr.mxu0 0.0
        %1651 = vmatpush1.msra.mxu0 0.0
        %1652 = vmatprep.subr.mxu0 0.0
        %1653 = vmatpush1.msra.mxu0 0.0
        %1654 = vmatprep.subr.mxu0 0.0
        %1655 = vmatpush1.msra.mxu0 %v253
        %1656 = vmatprep.subr.mxu0 0.0
        %1657 = vmatpush1.msra.mxu0 %v252
        %1658 = vmatprep.subr.mxu0 0.0
        %1659 = vmatpush2.msra.mxu0 0.0
        %1660 = vmatprep.subr.mxu0 0.0
        %1661 = vmatpush2.msra.mxu0 0.0
        %1662 = vmatprep.subr.mxu0 0.0
        %1663 = vmatpush2.msra.mxu0 0.0
        %1664 = vmatprep.subr.mxu0 0.0
        %1665 = vmatpush2.msra.mxu0 0.0
        %1666 = vmatprep.subr.mxu0 0.0
        %1667 = vmatpush2.msra.mxu0 0.0
        %1668 = vmatprep.subr.mxu0 0.0
        %1669 = vmatpush2.msra.mxu0 0.0
        %1670 = vmatprep.subr.mxu0 0.0
        %1671 = vmatpush2.msra.mxu0 0.0
        %1672 = vmatprep.subr.mxu0 0.0
        %1673 = vmatpush2.msra.mxu0 0.0
        %1674 = vmatprep.subr.mxu0 0.0
        %1675 = vmatpush2.msra.mxu0 0.0
        %1676 = vmatprep.subr.mxu0 0.0
        %1677 = vmatpush2.msra.mxu0 0.0
        %1678 = vmatprep.subr.mxu0 0.0
        %1679 = vmatpush2.msra.mxu0 0.0
        %1680 = vmatprep.subr.mxu0 0.0
        %1681 = vmatpush2.msra.mxu0 0.0
        %1682 = vmatprep.subr.mxu0 0.0
        %1683 = vmatpush2.msra.mxu0 0.0
        %1684 = vmatprep.subr.mxu0 0.0
        %1685 = vmatpush2.msra.mxu0 0.0
        %1686 = vmatprep.subr.mxu0 0.0
        %1687 = vmatpush2.msra.mxu0 0.0
        %1688 = vmatprep.subr.mxu0 0.0
        %1689 = vmatpush2.msra.mxu0 0.0
        %1690 = vmatprep.mubr.f32.mxu0 0.0
        %1691 = vmatmul.mubr.f32.gmra.mxu0 %v1624
        %v1692 = vpop.f32.mrf.mxu0
        %v1693 = vadd.f32 0.0, %v1692
        %v1694 = vpop.f32.mrf.mxu0
        %1695 = vdwg.mxu0
        %1696 = vmatprep.subr.mxu0 0.0
        %1697 = vmatpush1.msra.mxu0 0.0
        %1698 = vmatprep.subr.mxu0 0.0
        %1699 = vmatpush1.msra.mxu0 0.0
        %1700 = vmatprep.subr.mxu0 0.0
        %1701 = vmatpush1.msra.mxu0 0.0
        %1702 = vmatprep.subr.mxu0 0.0
        %1703 = vmatpush1.msra.mxu0 0.0
        %1704 = vmatprep.subr.mxu0 0.0
        %1705 = vmatpush1.msra.mxu0 0.0
        %1706 = vmatprep.subr.mxu0 0.0
        %1707 = vmatpush1.msra.mxu0 0.0
        %1708 = vmatprep.subr.mxu0 0.0
        %1709 = vmatpush1.msra.mxu0 0.0
        %1710 = vmatprep.subr.mxu0 0.0
        %1711 = vmatpush1.msra.mxu0 0.0
        %1712 = vmatprep.subr.mxu0 0.0
        %1713 = vmatpush1.msra.mxu0 0.0
        %1714 = vmatprep.subr.mxu0 0.0
        %1715 = vmatpush1.msra.mxu0 0.0
        %1716 = vmatprep.subr.mxu0 0.0
        %1717 = vmatpush1.msra.mxu0 0.0
        %1718 = vmatprep.subr.mxu0 0.0
        %1719 = vmatpush1.msra.mxu0 0.0
        %1720 = vmatprep.subr.mxu0 0.0
        %1721 = vmatpush1.msra.mxu0 0.0
        %1722 = vmatprep.subr.mxu0 0.0
        %1723 = vmatpush1.msra.mxu0 0.0
        %1724 = vmatprep.subr.mxu0 0.0
        %1725 = vmatpush1.msra.mxu0 %v256
        %1726 = vmatprep.subr.mxu0 0.0
        %1727 = vmatpush1.msra.mxu0 %v255
        %1728 = vmatprep.subr.mxu0 0.0
        %1729 = vmatpush2.msra.mxu0 0.0
        %1730 = vmatprep.subr.mxu0 0.0
        %1731 = vmatpush2.msra.mxu0 0.0
        %1732 = vmatprep.subr.mxu0 0.0
        %1733 = vmatpush2.msra.mxu0 0.0
        %1734 = vmatprep.subr.mxu0 0.0
        %1735 = vmatpush2.msra.mxu0 0.0
        %1736 = vmatprep.subr.mxu0 0.0
        %1737 = vmatpush2.msra.mxu0 0.0
        %1738 = vmatprep.subr.mxu0 0.0
        %1739 = vmatpush2.msra.mxu0 0.0
        %1740 = vmatprep.subr.mxu0 0.0
        %1741 = vmatpush2.msra.mxu0 0.0
        %1742 = vmatprep.subr.mxu0 0.0
        %1743 = vmatpush2.msra.mxu0 0.0
        %1744 = vmatprep.subr.mxu0 0.0
        %1745 = vmatpush2.msra.mxu0 0.0
        %1746 = vmatprep.subr.mxu0 0.0
        %1747 = vmatpush2.msra.mxu0 0.0
        %1748 = vmatprep.subr.mxu0 0.0
        %1749 = vmatpush2.msra.mxu0 0.0
        %1750 = vmatprep.subr.mxu0 0.0
        %1751 = vmatpush2.msra.mxu0 0.0
        %1752 = vmatprep.subr.mxu0 0.0
        %1753 = vmatpush2.msra.mxu0 0.0
        %1754 = vmatprep.subr.mxu0 0.0
        %1755 = vmatpush2.msra.mxu0 0.0
        %1756 = vmatprep.subr.mxu0 0.0
        %1757 = vmatpush2.msra.mxu0 0.0
        %1758 = vmatprep.subr.mxu0 0.0
        %1759 = vmatpush2.msra.mxu0 0.0
        %1760 = vmatprep.mubr.f32.mxu0 0.0
        %1761 = vmatmul.mubr.f32.gmra.mxu0 %v1624
        %v1762 = vpop.f32.mrf.mxu0
        %v1763 = vadd.f32 0.0, %v1762
        %v1764 = vpop.f32.mrf.mxu0
        %1765 = vdwg.mxu0
        %1766 = vmatprep.subr.mxu0 0.0
        %1767 = vmatpush1.msra.mxu0 0.0
        %1768 = vmatprep.subr.mxu0 0.0
        %1769 = vmatpush1.msra.mxu0 0.0
        %1770 = vmatprep.subr.mxu0 0.0
        %1771 = vmatpush1.msra.mxu0 0.0
        %1772 = vmatprep.subr.mxu0 0.0
        %1773 = vmatpush1.msra.mxu0 0.0
        %1774 = vmatprep.subr.mxu0 0.0
        %1775 = vmatpush1.msra.mxu0 0.0
        %1776 = vmatprep.subr.mxu0 0.0
        %1777 = vmatpush1.msra.mxu0 0.0
        %1778 = vmatprep.subr.mxu0 0.0
        %1779 = vmatpush1.msra.mxu0 0.0
        %1780 = vmatprep.subr.mxu0 0.0
        %1781 = vmatpush1.msra.mxu0 0.0
        %1782 = vmatprep.subr.mxu0 0.0
        %1783 = vmatpush1.msra.mxu0 0.0
        %1784 = vmatprep.subr.mxu0 0.0
        %1785 = vmatpush1.msra.mxu0 0.0
        %1786 = vmatprep.subr.mxu0 0.0
        %1787 = vmatpush1.msra.mxu0 0.0
        %1788 = vmatprep.subr.mxu0 0.0
        %1789 = vmatpush1.msra.mxu0 0.0
        %1790 = vmatprep.subr.mxu0 0.0
        %1791 = vmatpush1.msra.mxu0 0.0
        %1792 = vmatprep.subr.mxu0 0.0
        %1793 = vmatpush1.msra.mxu0 0.0
        %1794 = vmatprep.subr.mxu0 0.0
        %1795 = vmatpush1.msra.mxu0 %v1552
        %1796 = vmatprep.subr.mxu0 0.0
        %1797 = vmatpush1.msra.mxu0 %v1551
        %1798 = vmatprep.subr.mxu0 0.0
        %1799 = vmatpush2.msra.mxu0 0.0
        %1800 = vmatprep.subr.mxu0 0.0
        %1801 = vmatpush2.msra.mxu0 0.0
        %1802 = vmatprep.subr.mxu0 0.0
        %1803 = vmatpush2.msra.mxu0 0.0
        %1804 = vmatprep.subr.mxu0 0.0
        %1805 = vmatpush2.msra.mxu0 0.0
        %1806 = vmatprep.subr.mxu0 0.0
        %1807 = vmatpush2.msra.mxu0 0.0
        %1808 = vmatprep.subr.mxu0 0.0
        %1809 = vmatpush2.msra.mxu0 0.0
        %1810 = vmatprep.subr.mxu0 0.0
        %1811 = vmatpush2.msra.mxu0 0.0
        %1812 = vmatprep.subr.mxu0 0.0
        %1813 = vmatpush2.msra.mxu0 0.0
        %1814 = vmatprep.subr.mxu0 0.0
        %1815 = vmatpush2.msra.mxu0 0.0
        %1816 = vmatprep.subr.mxu0 0.0
        %1817 = vmatpush2.msra.mxu0 0.0
        %1818 = vmatprep.subr.mxu0 0.0
        %1819 = vmatpush2.msra.mxu0 0.0
        %1820 = vmatprep.subr.mxu0 0.0
        %1821 = vmatpush2.msra.mxu0 0.0
        %1822 = vmatprep.subr.mxu0 0.0
        %1823 = vmatpush2.msra.mxu0 0.0
        %1824 = vmatprep.subr.mxu0 0.0
        %1825 = vmatpush2.msra.mxu0 0.0
        %1826 = vmatprep.subr.mxu0 0.0
        %1827 = vmatpush2.msra.mxu0 0.0
        %1828 = vmatprep.subr.mxu0 0.0
        %1829 = vmatpush2.msra.mxu0 0.0
        %1830 = vmatprep.mubr.f32.mxu0 0.0
        %1831 = vmatmul.mubr.f32.gmra.mxu0 %v477
        %v1832 = vpop.f32.mrf.mxu0
        %v1833 = vadd.f32 0.0, %v1832
        %v1834 = vpop.f32.mrf.mxu0
        %1835 = vdwg.mxu0
        %v1837 = vsel %vm259, %v1833, 0
        %1839 = vmatprep.subr.mxu0 0.0
        %1840 = vmatpush1.msra.mxu0 0.0
        %1841 = vmatprep.subr.mxu0 0.0
        %1842 = vmatpush1.msra.mxu0 0.0
        %1843 = vmatprep.subr.mxu0 0.0
        %1844 = vmatpush1.msra.mxu0 0.0
        %1845 = vmatprep.subr.mxu0 0.0
        %1846 = vmatpush1.msra.mxu0 0.0
        %1847 = vmatprep.subr.mxu0 0.0
        %1848 = vmatpush1.msra.mxu0 0.0
        %1849 = vmatprep.subr.mxu0 0.0
        %1850 = vmatpush1.msra.mxu0 0.0
        %1851 = vmatprep.subr.mxu0 0.0
        %1852 = vmatpush1.msra.mxu0 0.0
        %1853 = vmatprep.subr.mxu0 0.0
        %1854 = vmatpush1.msra.mxu0 0.0
        %1855 = vmatprep.subr.mxu0 0.0
        %1856 = vmatpush1.msra.mxu0 0.0
        %1857 = vmatprep.subr.mxu0 0.0
        %1858 = vmatpush1.msra.mxu0 0.0
        %1859 = vmatprep.subr.mxu0 0.0
        %1860 = vmatpush1.msra.mxu0 0.0
        %1861 = vmatprep.subr.mxu0 0.0
        %1862 = vmatpush1.msra.mxu0 0.0
        %1863 = vmatprep.subr.mxu0 0.0
        %1864 = vmatpush1.msra.mxu0 0.0
        %1865 = vmatprep.subr.mxu0 0.0
        %1866 = vmatpush1.msra.mxu0 0.0
        %1867 = vmatprep.subr.mxu0 0.0
        %1868 = vmatpush1.msra.mxu0 %v253
        %1869 = vmatprep.subr.mxu0 0.0
        %1870 = vmatpush1.msra.mxu0 %v252
        %1871 = vmatprep.subr.mxu0 0.0
        %1872 = vmatpush2.msra.mxu0 0.0
        %1873 = vmatprep.subr.mxu0 0.0
        %1874 = vmatpush2.msra.mxu0 0.0
        %1875 = vmatprep.subr.mxu0 0.0
        %1876 = vmatpush2.msra.mxu0 0.0
        %1877 = vmatprep.subr.mxu0 0.0
        %1878 = vmatpush2.msra.mxu0 0.0
        %1879 = vmatprep.subr.mxu0 0.0
        %1880 = vmatpush2.msra.mxu0 0.0
        %1881 = vmatprep.subr.mxu0 0.0
        %1882 = vmatpush2.msra.mxu0 0.0
        %1883 = vmatprep.subr.mxu0 0.0
        %1884 = vmatpush2.msra.mxu0 0.0
        %1885 = vmatprep.subr.mxu0 0.0
        %1886 = vmatpush2.msra.mxu0 0.0
        %1887 = vmatprep.subr.mxu0 0.0
        %1888 = vmatpush2.msra.mxu0 0.0
        %1889 = vmatprep.subr.mxu0 0.0
        %1890 = vmatpush2.msra.mxu0 0.0
        %1891 = vmatprep.subr.mxu0 0.0
        %1892 = vmatpush2.msra.mxu0 0.0
        %1893 = vmatprep.subr.mxu0 0.0
        %1894 = vmatpush2.msra.mxu0 0.0
        %1895 = vmatprep.subr.mxu0 0.0
        %1896 = vmatpush2.msra.mxu0 0.0
        %1897 = vmatprep.subr.mxu0 0.0
        %1898 = vmatpush2.msra.mxu0 0.0
        %1899 = vmatprep.subr.mxu0 0.0
        %1900 = vmatpush2.msra.mxu0 0.0
        %1901 = vmatprep.subr.mxu0 0.0
        %1902 = vmatpush2.msra.mxu0 0.0
        %1903 = vmatprep.mubr.f32.mxu0 0.0
        %1904 = vmatmul.mubr.f32.gmra.mxu0 %v1837
        %v1905 = vpop.f32.mrf.mxu0
        %v1906 = vadd.f32 0.0, %v1905
        %v1907 = vpop.f32.mrf.mxu0
        %1908 = vdwg.mxu0
        %1909 = vmatprep.subr.mxu0 0.0
        %1910 = vmatpush1.msra.mxu0 0.0
        %1911 = vmatprep.subr.mxu0 0.0
        %1912 = vmatpush1.msra.mxu0 0.0
        %1913 = vmatprep.subr.mxu0 0.0
        %1914 = vmatpush1.msra.mxu0 0.0
        %1915 = vmatprep.subr.mxu0 0.0
        %1916 = vmatpush1.msra.mxu0 0.0
        %1917 = vmatprep.subr.mxu0 0.0
        %1918 = vmatpush1.msra.mxu0 0.0
        %1919 = vmatprep.subr.mxu0 0.0
        %1920 = vmatpush1.msra.mxu0 0.0
        %1921 = vmatprep.subr.mxu0 0.0
        %1922 = vmatpush1.msra.mxu0 0.0
        %1923 = vmatprep.subr.mxu0 0.0
        %1924 = vmatpush1.msra.mxu0 0.0
        %1925 = vmatprep.subr.mxu0 0.0
        %1926 = vmatpush1.msra.mxu0 0.0
        %1927 = vmatprep.subr.mxu0 0.0
        %1928 = vmatpush1.msra.mxu0 0.0
        %1929 = vmatprep.subr.mxu0 0.0
        %1930 = vmatpush1.msra.mxu0 0.0
        %1931 = vmatprep.subr.mxu0 0.0
        %1932 = vmatpush1.msra.mxu0 0.0
        %1933 = vmatprep.subr.mxu0 0.0
        %1934 = vmatpush1.msra.mxu0 0.0
        %1935 = vmatprep.subr.mxu0 0.0
        %1936 = vmatpush1.msra.mxu0 0.0
        %1937 = vmatprep.subr.mxu0 0.0
        %1938 = vmatpush1.msra.mxu0 %v256
        %1939 = vmatprep.subr.mxu0 0.0
        %1940 = vmatpush1.msra.mxu0 %v255
        %1941 = vmatprep.subr.mxu0 0.0
        %1942 = vmatpush2.msra.mxu0 0.0
        %1943 = vmatprep.subr.mxu0 0.0
        %1944 = vmatpush2.msra.mxu0 0.0
        %1945 = vmatprep.subr.mxu0 0.0
        %1946 = vmatpush2.msra.mxu0 0.0
        %1947 = vmatprep.subr.mxu0 0.0
        %1948 = vmatpush2.msra.mxu0 0.0
        %1949 = vmatprep.subr.mxu0 0.0
        %1950 = vmatpush2.msra.mxu0 0.0
        %1951 = vmatprep.subr.mxu0 0.0
        %1952 = vmatpush2.msra.mxu0 0.0
        %1953 = vmatprep.subr.mxu0 0.0
        %1954 = vmatpush2.msra.mxu0 0.0
        %1955 = vmatprep.subr.mxu0 0.0
        %1956 = vmatpush2.msra.mxu0 0.0
        %1957 = vmatprep.subr.mxu0 0.0
        %1958 = vmatpush2.msra.mxu0 0.0
        %1959 = vmatprep.subr.mxu0 0.0
        %1960 = vmatpush2.msra.mxu0 0.0
        %1961 = vmatprep.subr.mxu0 0.0
        %1962 = vmatpush2.msra.mxu0 0.0
        %1963 = vmatprep.subr.mxu0 0.0
        %1964 = vmatpush2.msra.mxu0 0.0
        %1965 = vmatprep.subr.mxu0 0.0
        %1966 = vmatpush2.msra.mxu0 0.0
        %1967 = vmatprep.subr.mxu0 0.0
        %1968 = vmatpush2.msra.mxu0 0.0
        %1969 = vmatprep.subr.mxu0 0.0
        %1970 = vmatpush2.msra.mxu0 0.0
        %1971 = vmatprep.subr.mxu0 0.0
        %1972 = vmatpush2.msra.mxu0 0.0
        %1973 = vmatprep.mubr.f32.mxu0 0.0
        %1974 = vmatmul.mubr.f32.gmra.mxu0 %v1837
        %v1975 = vpop.f32.mrf.mxu0
        %v1976 = vadd.f32 0.0, %v1975
        %v1977 = vpop.f32.mrf.mxu0
        %1978 = vdwg.mxu0
        %s1979 = sld [smem:[#allocation2]]
        %v1980 = vstv %s1979
        %v1981 = vmul.f32 %v1980, %v403
        %v1982 = vadd.f32 %v1981, 0.0
        %s1983 = sld [smem:[#allocation2 + $0x1]]
        %v1984 = vstv %s1983
        %v1985 = vmul.f32 %v1984, %v473
        %v1986 = vadd.f32 %v1982, %v1985
        %s1987 = sld [smem:[#allocation2 + $0x2]]
        %v1988 = vstv %s1987
        %v1989 = vmul.f32 %v1988, %v619
        %v1990 = vadd.f32 %v1986, %v1989
        %s1991 = sld [smem:[#allocation2 + $0x3]]
        %v1992 = vstv %s1991
        %v1993 = vmul.f32 %v1992, %v689
        %v1994 = vadd.f32 %v1990, %v1993
        %s1995 = sld [smem:[#allocation2 + $0x4]]
        %v1996 = vstv %s1995
        %v1997 = vmul.f32 %v1996, %v835
        %v1998 = vadd.f32 %v1994, %v1997
        %s1999 = sld [smem:[#allocation2 + $0x5]]
        %v2000 = vstv %s1999
        %v2001 = vmul.f32 %v2000, %v905
        %v2002 = vadd.f32 %v1998, %v2001
        %s2003 = sld [smem:[#allocation2 + $0x6]]
        %v2004 = vstv %s2003
        %v2005 = vmul.f32 %v2004, %v1048
        %v2006 = vadd.f32 %v2002, %v2005
        %s2007 = sld [smem:[#allocation2 + $0x7]]
        %v2008 = vstv %s2007
        %v2009 = vmul.f32 %v2008, %v1118
        %v2010 = vadd.f32 %v2006, %v2009
        %s2011 = sld [smem:[#allocation2 + $0x8]]
        %v2012 = vstv %s2011
        %v2013 = vmul.f32 %v2012, %v1264
        %v2014 = vadd.f32 %v2010, %v2013
        %s2015 = sld [smem:[#allocation2 + $0x9]]
        %v2016 = vstv %s2015
        %v2017 = vmul.f32 %v2016, %v1334
        %v2018 = vadd.f32 %v2014, %v2017
        %s2019 = sld [smem:[#allocation2 + $0xa]]
        %v2020 = vstv %s2019
        %v2021 = vmul.f32 %v2020, %v1477
        %v2022 = vadd.f32 %v2018, %v2021
        %s2023 = sld [smem:[#allocation2 + $0xb]]
        %v2024 = vstv %s2023
        %v2025 = vmul.f32 %v2024, %v1547
        %v2026 = vadd.f32 %v2022, %v2025
        %s2027 = sld [smem:[#allocation2 + $0xc]]
        %v2028 = vstv %s2027
        %v2029 = vmul.f32 %v2028, %v1693
        %v2030 = vadd.f32 %v2026, %v2029
        %s2031 = sld [smem:[#allocation2 + $0xd]]
        %v2032 = vstv %s2031
        %v2033 = vmul.f32 %v2032, %v1763
        %v2034 = vadd.f32 %v2030, %v2033
        %s2035 = sld [smem:[#allocation2 + $0xe]]
        %v2036 = vstv %s2035
        %v2037 = vmul.f32 %v2036, %v1906
        %v2038 = vadd.f32 %v2034, %v2037
        %s2039 = sld [smem:[#allocation2 + $0xf]]
        %v2040 = vstv %s2039
        %v2041 = vmul.f32 %v2040, %v1976
        %v2042 = vadd.f32 %v2038, %v2041
        %vm2043 = vcmask 64512
        %2044 = vst.msk [vmem:[%s247] sm:$0xff] %vm2043, %v2042
        %s2045 = sld [smem:[#allocation2 + $0x10]]
        %v2046 = vstv %s2045
        %v2047 = vmul.f32 %v2046, %v403
        %v2048 = vadd.f32 %v2047, 0.0
        %s2049 = sld [smem:[#allocation2 + $0x11]]
        %v2050 = vstv %s2049
        %v2051 = vmul.f32 %v2050, %v473
        %v2052 = vadd.f32 %v2048, %v2051
        %s2053 = sld [smem:[#allocation2 + $0x12]]
        %v2054 = vstv %s2053
        %v2055 = vmul.f32 %v2054, %v619
        %v2056 = vadd.f32 %v2052, %v2055
        %s2057 = sld [smem:[#allocation2 + $0x13]]
        %v2058 = vstv %s2057
        %v2059 = vmul.f32 %v2058, %v689
        %v2060 = vadd.f32 %v2056, %v2059
        %s2061 = sld [smem:[#allocation2 + $0x14]]
        %v2062 = vstv %s2061
        %v2063 = vmul.f32 %v2062, %v835
        %v2064 = vadd.f32 %v2060, %v2063
        %s2065 = sld [smem:[#allocation2 + $0x15]]
        %v2066 = vstv %s2065
        %v2067 = vmul.f32 %v2066, %v905
        %v2068 = vadd.f32 %v2064, %v2067
        %s2069 = sld [smem:[#allocation2 + $0x16]]
        %v2070 = vstv %s2069
        %v2071 = vmul.f32 %v2070, %v1048
        %v2072 = vadd.f32 %v2068, %v2071
        %s2073 = sld [smem:[#allocation2 + $0x17]]
        %v2074 = vstv %s2073
        %v2075 = vmul.f32 %v2074, %v1118
        %v2076 = vadd.f32 %v2072, %v2075
        %s2077 = sld [smem:[#allocation2 + $0x18]]
        %v2078 = vstv %s2077
        %v2079 = vmul.f32 %v2078, %v1264
        %v2080 = vadd.f32 %v2076, %v2079
        %s2081 = sld [smem:[#allocation2 + $0x19]]
        %v2082 = vstv %s2081
        %v2083 = vmul.f32 %v2082, %v1334
        %v2084 = vadd.f32 %v2080, %v2083
        %s2085 = sld [smem:[#allocation2 + $0x1a]]
        %v2086 = vstv %s2085
        %v2087 = vmul.f32 %v2086, %v1477
        %v2088 = vadd.f32 %v2084, %v2087
        %s2089 = sld [smem:[#allocation2 + $0x1b]]
        %v2090 = vstv %s2089
        %v2091 = vmul.f32 %v2090, %v1547
        %v2092 = vadd.f32 %v2088, %v2091
        %s2093 = sld [smem:[#allocation2 + $0x1c]]
        %v2094 = vstv %s2093
        %v2095 = vmul.f32 %v2094, %v1693
        %v2096 = vadd.f32 %v2092, %v2095
        %s2097 = sld [smem:[#allocation2 + $0x1d]]
        %v2098 = vstv %s2097
        %v2099 = vmul.f32 %v2098, %v1763
        %v2100 = vadd.f32 %v2096, %v2099
        %s2101 = sld [smem:[#allocation2 + $0x1e]]
        %v2102 = vstv %s2101
        %v2103 = vmul.f32 %v2102, %v1906
        %v2104 = vadd.f32 %v2100, %v2103
        %s2105 = sld [smem:[#allocation2 + $0x1f]]
        %v2106 = vstv %s2105
        %v2107 = vmul.f32 %v2106, %v1976
        %v2108 = vadd.f32 %v2104, %v2107
        %s2109 = scalar_lea.vmem %s247, 8 [#allocation7]
        %2110 = vst.msk [vmem:[%s2109] sm:$0xff] %vm2043, %v2108
        %s2111 = sld [smem:[#allocation2 + $0x20]]
        %v2112 = vstv %s2111
        %v2113 = vmul.f32 %v2112, %v403
        %v2114 = vadd.f32 %v2113, 0.0
        %s2115 = sld [smem:[#allocation2 + $0x21]]
        %v2116 = vstv %s2115
        %v2117 = vmul.f32 %v2116, %v473
        %v2118 = vadd.f32 %v2114, %v2117
        %s2119 = sld [smem:[#allocation2 + $0x22]]
        %v2120 = vstv %s2119
        %v2121 = vmul.f32 %v2120, %v619
        %v2122 = vadd.f32 %v2118, %v2121
        %s2123 = sld [smem:[#allocation2 + $0x23]]
        %v2124 = vstv %s2123
        %v2125 = vmul.f32 %v2124, %v689
        %v2126 = vadd.f32 %v2122, %v2125
        %s2127 = sld [smem:[#allocation2 + $0x24]]
        %v2128 = vstv %s2127
        %v2129 = vmul.f32 %v2128, %v835
        %v2130 = vadd.f32 %v2126, %v2129
        %s2131 = sld [smem:[#allocation2 + $0x25]]
        %v2132 = vstv %s2131
        %v2133 = vmul.f32 %v2132, %v905
        %v2134 = vadd.f32 %v2130, %v2133
        %s2135 = sld [smem:[#allocation2 + $0x26]]
        %v2136 = vstv %s2135
        %v2137 = vmul.f32 %v2136, %v1048
        %v2138 = vadd.f32 %v2134, %v2137
        %s2139 = sld [smem:[#allocation2 + $0x27]]
        %v2140 = vstv %s2139
        %v2141 = vmul.f32 %v2140, %v1118
        %v2142 = vadd.f32 %v2138, %v2141
        %s2143 = sld [smem:[#allocation2 + $0x28]]
        %v2144 = vstv %s2143
        %v2145 = vmul.f32 %v2144, %v1264
        %v2146 = vadd.f32 %v2142, %v2145
        %s2147 = sld [smem:[#allocation2 + $0x29]]
        %v2148 = vstv %s2147
        %v2149 = vmul.f32 %v2148, %v1334
        %v2150 = vadd.f32 %v2146, %v2149
        %s2151 = sld [smem:[#allocation2 + $0x2a]]
        %v2152 = vstv %s2151
        %v2153 = vmul.f32 %v2152, %v1477
        %v2154 = vadd.f32 %v2150, %v2153
        %s2155 = sld [smem:[#allocation2 + $0x2b]]
        %v2156 = vstv %s2155
        %v2157 = vmul.f32 %v2156, %v1547
        %v2158 = vadd.f32 %v2154, %v2157
        %s2159 = sld [smem:[#allocation2 + $0x2c]]
        %v2160 = vstv %s2159
        %v2161 = vmul.f32 %v2160, %v1693
        %v2162 = vadd.f32 %v2158, %v2161
        %s2163 = sld [smem:[#allocation2 + $0x2d]]
        %v2164 = vstv %s2163
        %v2165 = vmul.f32 %v2164, %v1763
        %v2166 = vadd.f32 %v2162, %v2165
        %s2167 = sld [smem:[#allocation2 + $0x2e]]
        %v2168 = vstv %s2167
        %v2169 = vmul.f32 %v2168, %v1906
        %v2170 = vadd.f32 %v2166, %v2169
        %s2171 = sld [smem:[#allocation2 + $0x2f]]
        %v2172 = vstv %s2171
        %v2173 = vmul.f32 %v2172, %v1976
        %v2174 = vadd.f32 %v2170, %v2173
        %s2175 = scalar_lea.vmem %s247, 16 [#allocation7]
        %2176 = vst.msk [vmem:[%s2175] sm:$0xff] %vm2043, %v2174
        %s2177 = sld [smem:[#allocation2 + $0x30]]
        %v2178 = vstv %s2177
        %v2179 = vmul.f32 %v2178, %v403
        %v2180 = vadd.f32 %v2179, 0.0
        %s2181 = sld [smem:[#allocation2 + $0x31]]
        %v2182 = vstv %s2181
        %v2183 = vmul.f32 %v2182, %v473
        %v2184 = vadd.f32 %v2180, %v2183
        %s2185 = sld [smem:[#allocation2 + $0x32]]
        %v2186 = vstv %s2185
        %v2187 = vmul.f32 %v2186, %v619
        %v2188 = vadd.f32 %v2184, %v2187
        %s2189 = sld [smem:[#allocation2 + $0x33]]
        %v2190 = vstv %s2189
        %v2191 = vmul.f32 %v2190, %v689
        %v2192 = vadd.f32 %v2188, %v2191
        %s2193 = sld [smem:[#allocation2 + $0x34]]
        %v2194 = vstv %s2193
        %v2195 = vmul.f32 %v2194, %v835
        %v2196 = vadd.f32 %v2192, %v2195
        %s2197 = sld [smem:[#allocation2 + $0x35]]
        %v2198 = vstv %s2197
        %v2199 = vmul.f32 %v2198, %v905
        %v2200 = vadd.f32 %v2196, %v2199
        %s2201 = sld [smem:[#allocation2 + $0x36]]
        %v2202 = vstv %s2201
        %v2203 = vmul.f32 %v2202, %v1048
        %v2204 = vadd.f32 %v2200, %v2203
        %s2205 = sld [smem:[#allocation2 + $0x37]]
        %v2206 = vstv %s2205
        %v2207 = vmul.f32 %v2206, %v1118
        %v2208 = vadd.f32 %v2204, %v2207
        %s2209 = sld [smem:[#allocation2 + $0x38]]
        %v2210 = vstv %s2209
        %v2211 = vmul.f32 %v2210, %v1264
        %v2212 = vadd.f32 %v2208, %v2211
        %s2213 = sld [smem:[#allocation2 + $0x39]]
        %v2214 = vstv %s2213
        %v2215 = vmul.f32 %v2214, %v1334
        %v2216 = vadd.f32 %v2212, %v2215
        %s2217 = sld [smem:[#allocation2 + $0x3a]]
        %v2218 = vstv %s2217
        %v2219 = vmul.f32 %v2218, %v1477
        %v2220 = vadd.f32 %v2216, %v2219
        %s2221 = sld [smem:[#allocation2 + $0x3b]]
        %v2222 = vstv %s2221
        %v2223 = vmul.f32 %v2222, %v1547
        %v2224 = vadd.f32 %v2220, %v2223
        %s2225 = sld [smem:[#allocation2 + $0x3c]]
        %v2226 = vstv %s2225
        %v2227 = vmul.f32 %v2226, %v1693
        %v2228 = vadd.f32 %v2224, %v2227
        %s2229 = sld [smem:[#allocation2 + $0x3d]]
        %v2230 = vstv %s2229
        %v2231 = vmul.f32 %v2230, %v1763
        %v2232 = vadd.f32 %v2228, %v2231
        %s2233 = sld [smem:[#allocation2 + $0x3e]]
        %v2234 = vstv %s2233
        %v2235 = vmul.f32 %v2234, %v1906
        %v2236 = vadd.f32 %v2232, %v2235
        %s2237 = sld [smem:[#allocation2 + $0x3f]]
        %v2238 = vstv %s2237
        %v2239 = vmul.f32 %v2238, %v1976
        %v2240 = vadd.f32 %v2236, %v2239
        %s2241 = scalar_lea.vmem %s247, 24 [#allocation7]
        %2242 = vst.msk [vmem:[%s2241] sm:$0xff] %vm2043, %v2240
        %s2243 = sand.u32 %s135, 1
        %s2244 = scalar_lea.sflag [#allocation4], %s2243
        %s2245 = sand.u32 %s135, 1
        %s2246 = smul.addr %s2245, 32
        %s2247 = scalar_lea.vmem [#allocation7], %s2246
        // Predicated region
        $region45: #{tpu_custom_call.1} parent=35 // pred_check
          %p2248 = pneg %p145
        $region46: #{tpu_custom_call.1} parent=35 // pred_check_branch
          %2250 = sbr.rel (%p2248) target = $region48
        $region47: #{tpu_custom_call.1} parent=35 // pred_region
          %s2252 = ssub.s32 512, 512
          %2253 = vsyncadd %s2244, %s2252
          %s2254 = smul.addr %s26, 4
          %s2255 = sadd.s32 %s27, %s2254
          %s2256 = smul.addr %s2255, 128
          %s2257 = scalar_lea.hbm %s4, %s2256
          %s2258 = sshll.u32 %s2247, 4
          %s2259 = int_to_ptr.vmem [resolvable:$true] %s2258
          %2264 = dma.vmem_to_hbm [thread:$0]  %s2259, 512, %s2257, %s2244, 128, 128, 8
        $region48: #{tpu_custom_call.1} parent=35 // pred_fallthru
          _
      $region36: #{tpu_custom_call.1} parent=5 // pred_fallthru
        _
      %p2265 = scmp.le.s32.totalorder 2, %s17
      // Predicated region
      $region49: #{tpu_custom_call.1} parent=5 // pred_check
        %p2266 = pneg %p2265
      $region50: #{tpu_custom_call.1} parent=5 // pred_check_branch
        %2268 = sbr.rel (%p2266) target = $region52
      $region51: #{tpu_custom_call.1} parent=5 // pred_region
        %s2269 = ssub.s32 %s17, 2
        // Predicated region
        $region53: #{tpu_custom_call.1} parent=51 // pred_check
          %p2270 = pneg %p151
        $region54: #{tpu_custom_call.1} parent=51 // pred_check_branch
          %2272 = sbr.rel (%p2270) target = $region56
        $region55: #{tpu_custom_call.1} parent=51 // pred_region
          %s2273 = sand.u32 %s136, 1
          %s2274 = scalar_lea.sflag [#allocation4], %s2273
          %s2275 = sand.u32 %s136, 1
          %s2276 = smul.addr %s2275, 32
          %s2277 = scalar_lea.vmem [#allocation7], %s2276
          %2278 = dma.done %s2274, 512
        $region56: #{tpu_custom_call.1} parent=51 // pred_fallthru
          _
      $region52: #{tpu_custom_call.1} parent=5 // pred_fallthru
        _
    $region6: #{tpu_custom_call.1} parent=1 // loop_footer
      %s21 = sadd.s32 1, %s17
    $region7: #{tpu_custom_call.1} parent=1 // loop_footer_branch
      %16 = sbr.rel target = $region3
    $region8: #{tpu_custom_call.1} parent=1 // loop_exit
      _
    %2279 = vsyncpa [#allocation3], 1
    %s2280 = scalar_lea.sflag [#allocation3], 1
    %2281 = vsyncpa %s2280, 1
    %2282 = vsyncpa [#allocation4], 1
    %s2283 = scalar_lea.sflag [#allocation4], 1
    %2284 = vsyncpa %s2283, 1
    %2285 = vsyncpa [#allocation5], 1
    %s2286 = scalar_lea.sflag [#allocation5], 1
    %2287 = vsyncpa %s2286, 1

</llo_original>
